<compile_context>
chip_gen: v6e
topology: v6e:2x2x1
jax: 0.10.0
libtpu: 0.0.40
codegen_flags: <defaults>
</compile_context>

<pallas_src>
import math
import jax
import jax.numpy as jnp
import numpy as np
from jax.experimental import pallas as pl
from jax.experimental.pallas import tpu as pltpu

# ----- configuration (small synthetic sizes) -----
B, S, D = 2, 8, 32          # batch, sequence length, model size
H = 4                       # num attention heads
DH = D // H                 # head dim
FF = 64                     # feed-forward inner size
EPS = 1e-6                  # LayerNorm eps
PW = max(3 * D, FF)         # packed small-param row width


def _layer_norm(x, gamma, beta):
    mean = jnp.mean(x, axis=-1, keepdims=True)
    var = jnp.mean((x - mean) ** 2, axis=-1, keepdims=True)
    return (x - mean) * jax.lax.rsqrt(var + EPS) * gamma + beta


def encoder_layer_kernel(x_ref, mask_ref, wqkv_ref, wo_ref, w1_ref, w2_ref,
                         sp_ref, out_ref):
    # One batch element per grid step; weights stay resident (constant index_map).
    x = x_ref[...].astype(jnp.float32)            # (S, D)
    mask = mask_ref[0]                            # (1, S) key mask

    # unpack the single packed small-parameter block
    sp = sp_ref[...]                              # (8, PW) f32
    ln1_g, ln1_b = sp[0:1, :D], sp[1:2, :D]
    ln2_g, ln2_b = sp[2:3, :D], sp[3:4, :D]
    b_qkv = sp[4:5, :3 * D]
    b_o = sp[5:6, :D]
    b_1 = sp[6:7, :FF]
    b_2 = sp[7:8, :D]

    # ---------------- self-attention sublayer ----------------
    xn = _layer_norm(x, ln1_g, ln1_b)             # (S, D) f32

    # fused QKV projection (1/sqrt(DH) already folded into the Q slice of W/b)
    qkv = jnp.dot(xn.astype(jnp.bfloat16), wqkv_ref[...],
                  preferred_element_type=jnp.float32) + b_qkv       # (S, 3D) f32
    q = qkv[:, 0:D].reshape(S, H, DH)
    k = qkv[:, D:2 * D].reshape(S, H, DH)
    v = qkv[:, 2 * D:3 * D].reshape(S, H, DH)

    # additive key-mask bias, computed once; broadcasts over heads and queries
    neg_bias = jnp.where(mask > 0.0, jnp.float32(0.0), jnp.float32(-1e30))  # (1, S)

    # all heads in one batched contraction + a single softmax chain
    s = jnp.einsum('qhd,khd->hqk', q, k,
                   preferred_element_type=jnp.float32)              # (H, S, S)
    s = s + neg_bias
    s = s - jnp.max(s, axis=-1, keepdims=True)
    p = jnp.exp(s)
    p = p * pl.reciprocal(jnp.sum(p, axis=-1, keepdims=True), approx=True)
    ctx = jnp.einsum('hqk,khd->qhd', p, v,
                     preferred_element_type=jnp.float32)            # (S, H, DH)
    ctx = ctx.reshape(S, D)                        # heads stay merged (no concat)

    att = jnp.dot(ctx.astype(jnp.bfloat16), wo_ref[...],
                  preferred_element_type=jnp.float32) + b_o
    h_res = att + x                                # dropout == identity (eval mode)

    # ---------------- position-wise feed-forward sublayer ----------------
    hn = _layer_norm(h_res, ln2_g, ln2_b)
    f1 = jnp.maximum(
        jnp.dot(hn.astype(jnp.bfloat16), w1_ref[...],
                preferred_element_type=jnp.float32) + b_1, 0.0)
    f2 = jnp.dot(f1.astype(jnp.bfloat16), w2_ref[...],
                 preferred_element_type=jnp.float32) + b_2

    out_ref[...] = (f2 + h_res).astype(out_ref.dtype)


def pack_params(p):
    """One-time parameter packing; hoisted out of the steady-state call path."""
    scale = 1.0 / math.sqrt(DH)
    # fuse QKV weights/biases; fold the attention scale into the Q slice
    wqkv = jnp.concatenate([p['wq'] * scale, p['wk'], p['wv']], axis=1)   # (D, 3D)
    bqkv = jnp.concatenate([p['bq'] * scale, p['bk'], p['bv']], axis=1)   # (1, 3D)

    # pack every small (1-row, <=PW) parameter into one (8, PW) f32 block
    def pad_row(r):
        return jnp.pad(r, ((0, 0), (0, PW - r.shape[1])))
    sp = jnp.concatenate([
        pad_row(p['ln1'][0:1]), pad_row(p['ln1'][1:2]),
        pad_row(p['ln2'][0:1]), pad_row(p['ln2'][1:2]),
        pad_row(bqkv), pad_row(p['bo']), pad_row(p['b1']), pad_row(p['b2']),
    ], axis=0).astype(jnp.float32)                                        # (8, PW)

    return dict(
        wqkv=jax.device_put(wqkv.astype(jnp.bfloat16)),
        wo=jax.device_put(p['wo'].astype(jnp.bfloat16)),
        w1=jax.device_put(p['w1'].astype(jnp.bfloat16)),
        w2=jax.device_put(p['w2'].astype(jnp.bfloat16)),
        sp=jax.device_put(sp),
    )


@jax.jit
def transformer_encoder_layer(x, mask, wqkv, wo, w1, w2, sp):
    # (B,S,D) <-> (B*S,D) reshapes live in the wrapper (free layout metadata);
    # the kernel only ever sees lane-dense 2-D slabs for x / out.
    x2 = x.reshape(B * S, D)

    grid_spec = pltpu.PrefetchScalarGridSpec(
        num_scalar_prefetch=0,
        grid=(B,),                                       # real parallel axis (v7x megacore)
        in_specs=[
            pl.BlockSpec((S, D), lambda b: (b, 0)),      # rows of this batch element
            pl.BlockSpec((1, 1, S), lambda b: (b, 0, 0)),  # key mask for this element
            pl.BlockSpec((D, 3 * D), lambda b: (0, 0)),  # fused Wqkv (bf16), resident
            pl.BlockSpec((D, D), lambda b: (0, 0)),      # Wo (bf16), resident
            pl.BlockSpec((D, FF), lambda b: (0, 0)),     # W1 (bf16), resident
            pl.BlockSpec((FF, D), lambda b: (0, 0)),     # W2 (bf16), resident
            pl.BlockSpec((8, PW), lambda b: (0, 0)),     # packed small params, resident
        ],
        out_specs=pl.BlockSpec((S, D), lambda b: (b, 0)),
    )

    out2 = pl.pallas_call(
        encoder_layer_kernel,
        out_shape=jax.ShapeDtypeStruct((B * S, D), jnp.float32),
        grid_spec=grid_spec,
        compiler_params=pltpu.CompilerParams(
            dimension_semantics=("parallel",),
            # Explicit VMEM budget (footprint here is ~20 KiB); chosen to stay well
            # inside v7x's 64 MiB physical / 32 MiB default-scoped VMEM when scaled.
            vmem_limit_bytes=32 * 1024 * 1024,
        ),
    )(x2, mask, wqkv, wo, w1, w2, sp)

    return out2.reshape(B, S, D)


def reference(x, mask, p):
    """Pure-JAX f32 reference for correctness check."""
    def ln(t, gb):
        m = t.mean(-1, keepdims=True)
        v = ((t - m) ** 2).mean(-1, keepdims=True)
        return (t - m) / jnp.sqrt(v + EPS) * gb[0] + gb[1]

    xn = ln(x, p['ln1'])
    q = xn @ p['wq'] + p['bq']
    k = xn @ p['wk'] + p['bk']
    v = xn @ p['wv'] + p['bv']
    qh = q.reshape(B, S, H, DH).transpose(0, 2, 1, 3) / math.sqrt(DH)
    kh = k.reshape(B, S, H, DH).transpose(0, 2, 1, 3)
    vh = v.reshape(B, S, H, DH).transpose(0, 2, 1, 3)
    sc = jnp.einsum('bhqd,bhkd->bhqk', qh, kh)
    keep = (mask > 0.0)[:, None, :, :]
    sc = jnp.where(keep, sc, -1e30)
    a = jax.nn.softmax(sc, axis=-1)
    ctx = jnp.einsum('bhqk,bhkd->bhqd', a, vh).transpose(0, 2, 1, 3).reshape(B, S, D)
    att = ctx @ p['wo'] + p['bo']
    h = att + x
    hn = ln(h, p['ln2'])
    ff = jnp.maximum(hn @ p['w1'] + p['b1'], 0.0) @ p['w2'] + p['b2']
    return ff + h


def init_params(key):
    ks = jax.random.split(key, 12)
    scale = 0.1
    return {
        'ln1': jnp.concatenate([jnp.ones((1, D)), jnp.zeros((1, D))], axis=0),
        'wq': scale * jax.random.normal(ks[0], (D, D), jnp.float32),
        'wk': scale * jax.random.normal(ks[1], (D, D), jnp.float32),
        'wv': scale * jax.random.normal(ks[2], (D, D), jnp.float32),
        'wo': scale * jax.random.normal(ks[3], (D, D), jnp.float32),
        'bq': scale * jax.random.normal(ks[4], (1, D), jnp.float32),
        'bk': scale * jax.random.normal(ks[5], (1, D), jnp.float32),
        'bv': scale * jax.random.normal(ks[6], (1, D), jnp.float32),
        'bo': scale * jax.random.normal(ks[7], (1, D), jnp.float32),
        'ln2': jnp.concatenate([jnp.ones((1, D)), jnp.zeros((1, D))], axis=0),
        'w1': scale * jax.random.normal(ks[8], (D, FF), jnp.float32),
        'b1': scale * jax.random.normal(ks[9], (1, FF), jnp.float32),
        'w2': scale * jax.random.normal(ks[10], (FF, D), jnp.float32),
        'b2': scale * jax.random.normal(ks[11], (1, D), jnp.float32),
    }


if __name__ == "__main__":
    key = jax.random.PRNGKey(0)
    kx, kp = jax.random.split(key)

    x = jax.random.normal(kx, (B, S, D), jnp.float32)
    # mask: all positions valid, except last 2 keys of batch element 1 masked out.
    mask = jnp.ones((B, 1, S), jnp.float32).at[1, 0, S - 2:].set(0.0)
    # TODO(synk): rl_pe is unused in the reference forward (passed as None) -> not implemented.

    params = init_params(kp)
    packed = pack_params(params)   # one-time packing (not in the per-call path)

    out = transformer_encoder_layer(x, mask, packed['wqkv'], packed['wo'],
                                    packed['w1'], packed['w2'], packed['sp'])
    out = jax.block_until_ready(out)

    ref = reference(x, mask, params)
    # bf16 matmul operands + approx reciprocal -> slightly looser tolerance vs f32 ref.
    np.testing.assert_allclose(np.asarray(out), np.asarray(ref), rtol=2e-2, atol=2e-2)

    print("KERNEL_OK")
</pallas_src>

<mosaic_0001>
module attributes {stable_mosaic.version = 11 : i64} {
  func.func @encoder_layer_kernel(%arg0: i32, %arg1: memref<8x32xf32, #tpu.memory_space<vmem>>, %arg2: memref<1x1x8xf32, #tpu.memory_space<vmem>>, %arg3: memref<32x96xbf16, #tpu.memory_space<vmem>>, %arg4: memref<32x32xbf16, #tpu.memory_space<vmem>>, %arg5: memref<32x64xbf16, #tpu.memory_space<vmem>>, %arg6: memref<64x32xbf16, #tpu.memory_space<vmem>>, %arg7: memref<8x96xf32, #tpu.memory_space<vmem>>, %arg8: memref<8x32xf32, #tpu.memory_space<vmem>>) attributes {dimension_semantics = [#tpu.dimension_semantics<parallel>], iteration_bounds = array<i64: 2>, scalar_prefetch = 0 : i64, scratch_operands = 0 : i64, tpu.core_type = #tpu.core_type<tc>, window_params = [{transform_indices = @transform_0, window_bounds = array<i64: 8, 32>}, {transform_indices = @transform_1, window_bounds = array<i64: 1, 1, 8>}, {pipeline_mode = #tpu.pipeline_mode<synchronous>, transform_indices = @transform_2, window_bounds = array<i64: 32, 96>}, {pipeline_mode = #tpu.pipeline_mode<synchronous>, transform_indices = @transform_3, window_bounds = array<i64: 32, 32>}, {pipeline_mode = #tpu.pipeline_mode<synchronous>, transform_indices = @transform_4, window_bounds = array<i64: 32, 64>}, {pipeline_mode = #tpu.pipeline_mode<synchronous>, transform_indices = @transform_5, window_bounds = array<i64: 64, 32>}, {pipeline_mode = #tpu.pipeline_mode<synchronous>, transform_indices = @transform_6, window_bounds = array<i64: 8, 96>}, {transform_indices = @transform_7, window_bounds = array<i64: 8, 32>}]} {
    %c0 = arith.constant 0 : index
    %c0_0 = arith.constant 0 : index
    %0 = vector.load %arg1[%c0, %c0_0] : memref<8x32xf32, #tpu.memory_space<vmem>>, vector<8x32xf32>
    %c0_1 = arith.constant 0 : index
    %c0_2 = arith.constant 0 : index
    %c0_3 = arith.constant 0 : index
    %1 = vector.load %arg2[%c0_1, %c0_2, %c0_3] : memref<1x1x8xf32, #tpu.memory_space<vmem>>, vector<1x1x8xf32>
    %2 = vector.shape_cast %1 : vector<1x1x8xf32> to vector<1x8xf32>
    %c0_4 = arith.constant 0 : index
    %c0_5 = arith.constant 0 : index
    %3 = vector.load %arg7[%c0_4, %c0_5] : memref<8x96xf32, #tpu.memory_space<vmem>>, vector<8x96xf32>
    %4 = vector.extract_strided_slice %3 {offsets = [0, 0], sizes = [1, 32], strides = [1, 1]} : vector<8x96xf32> to vector<1x32xf32>
    %5 = vector.extract_strided_slice %3 {offsets = [1, 0], sizes = [1, 32], strides = [1, 1]} : vector<8x96xf32> to vector<1x32xf32>
    %6 = vector.extract_strided_slice %3 {offsets = [2, 0], sizes = [1, 32], strides = [1, 1]} : vector<8x96xf32> to vector<1x32xf32>
    %7 = vector.extract_strided_slice %3 {offsets = [3, 0], sizes = [1, 32], strides = [1, 1]} : vector<8x96xf32> to vector<1x32xf32>
    %8 = vector.extract_strided_slice %3 {offsets = [4, 0], sizes = [1, 96], strides = [1, 1]} : vector<8x96xf32> to vector<1x96xf32>
    %9 = vector.extract_strided_slice %3 {offsets = [5, 0], sizes = [1, 32], strides = [1, 1]} : vector<8x96xf32> to vector<1x32xf32>
    %10 = vector.extract_strided_slice %3 {offsets = [6, 0], sizes = [1, 64], strides = [1, 1]} : vector<8x96xf32> to vector<1x64xf32>
    %11 = vector.extract_strided_slice %3 {offsets = [7, 0], sizes = [1, 32], strides = [1, 1]} : vector<8x96xf32> to vector<1x32xf32>
    %cst = arith.constant dense<0.000000e+00> : vector<8xf32>
    %12 = vector.multi_reduction <add>, %0, %cst [1] : vector<8x32xf32> to vector<8xf32>
    %13 = vector.shape_cast %12 : vector<8xf32> to vector<8x1xf32>
    %cst_6 = arith.constant 3.200000e+01 : f32
    %14 = vector.broadcast %cst_6 : f32 to vector<8x1xf32>
    %15 = arith.divf %13, %14 : vector<8x1xf32>
    %16 = vector.broadcast %15 : vector<8x1xf32> to vector<8x32xf32>
    %17 = arith.subf %0, %16 : vector<8x32xf32>
    %18 = arith.mulf %17, %17 : vector<8x32xf32>
    %cst_7 = arith.constant dense<0.000000e+00> : vector<8xf32>
    %19 = vector.multi_reduction <add>, %18, %cst_7 [1] : vector<8x32xf32> to vector<8xf32>
    %20 = vector.shape_cast %19 : vector<8xf32> to vector<8x1xf32>
    %cst_8 = arith.constant 3.200000e+01 : f32
    %21 = vector.broadcast %cst_8 : f32 to vector<8x1xf32>
    %22 = arith.divf %20, %21 : vector<8x1xf32>
    %23 = vector.broadcast %15 : vector<8x1xf32> to vector<8x32xf32>
    %24 = arith.subf %0, %23 : vector<8x32xf32>
    %cst_9 = arith.constant 9.99999997E-7 : f32
    %25 = vector.broadcast %cst_9 : f32 to vector<8x1xf32>
    %26 = arith.addf %22, %25 : vector<8x1xf32>
    %27 = math.rsqrt %26 : vector<8x1xf32>
    %28 = vector.broadcast %27 : vector<8x1xf32> to vector<8x32xf32>
    %29 = arith.mulf %24, %28 : vector<8x32xf32>
    %30 = vector.broadcast %4 : vector<1x32xf32> to vector<8x32xf32>
    %31 = arith.mulf %29, %30 : vector<8x32xf32>
    %32 = vector.broadcast %5 : vector<1x32xf32> to vector<8x32xf32>
    %33 = arith.addf %31, %32 : vector<8x32xf32>
    %34 = arith.truncf %33 : vector<8x32xf32> to vector<8x32xbf16>
    %c0_10 = arith.constant 0 : index
    %c0_11 = arith.constant 0 : index
    %35 = vector.load %arg3[%c0_10, %c0_11] : memref<32x96xbf16, #tpu.memory_space<vmem>>, vector<32x96xbf16>
    %cst_12 = arith.constant dense<0.000000e+00> : vector<8x96xf32>
    %36 = tpu.matmul %34, %35, %cst_12 {dimension_numbers = #tpu.dot_dimension_numbers<[1], [0], [0], [1], [0, 0, 1, 1], [], []>} : vector<8x32xbf16>, vector<32x96xbf16>, vector<8x96xf32> -> vector<8x96xf32>
    %37 = vector.broadcast %8 : vector<1x96xf32> to vector<8x96xf32>
    %38 = arith.addf %36, %37 : vector<8x96xf32>
    %39 = vector.extract_strided_slice %38 {offsets = [0, 0], sizes = [8, 32], strides = [1, 1]} : vector<8x96xf32> to vector<8x32xf32>
    %40 = vector.shape_cast %39 : vector<8x32xf32> to vector<8x4x8xf32>
    %41 = vector.extract_strided_slice %38 {offsets = [0, 32], sizes = [8, 32], strides = [1, 1]} : vector<8x96xf32> to vector<8x32xf32>
    %42 = vector.shape_cast %41 : vector<8x32xf32> to vector<8x4x8xf32>
    %43 = vector.extract_strided_slice %38 {offsets = [0, 64], sizes = [8, 32], strides = [1, 1]} : vector<8x96xf32> to vector<8x32xf32>
    %44 = vector.shape_cast %43 : vector<8x32xf32> to vector<8x4x8xf32>
    %cst_13 = arith.constant 0.000000e+00 : f32
    %45 = vector.broadcast %cst_13 : f32 to vector<1x8xf32>
    %46 = arith.cmpf ogt, %2, %45 : vector<1x8xf32>
    %cst_14 = arith.constant 0.000000e+00 : f32
    %cst_15 = arith.constant -1.000000e+30 : f32
    %47 = vector.broadcast %cst_14 : f32 to vector<1x8xf32>
    %48 = vector.broadcast %cst_15 : f32 to vector<1x8xf32>
    %49 = arith.select %46, %47, %48 : vector<1x8xi1>, vector<1x8xf32>
    "tpu.trace_start"() <{level = 10 : i32, message = "qhd,khd->hqk"}> : () -> ()
    %cst_16 = arith.constant dense<0.000000e+00> : vector<4x8x8xf32>
    %50 = tpu.matmul %40, %42, %cst_16 {dimension_numbers = #tpu.dot_dimension_numbers<[2], [2], [0], [0], [0, 1, 0, 0, 1, 0], [1], [1]>} : vector<8x4x8xf32>, vector<8x4x8xf32>, vector<4x8x8xf32> -> vector<4x8x8xf32>
    "tpu.trace_stop"() : () -> ()
    %51 = vector.shape_cast %49 : vector<1x8xf32> to vector<1x1x8xf32>
    %52 = vector.broadcast %51 : vector<1x1x8xf32> to vector<4x8x8xf32>
    %53 = arith.addf %50, %52 : vector<4x8x8xf32>
    %cst_17 = arith.constant dense<0xFF800000> : vector<4x8xf32>
    %54 = vector.multi_reduction <maximumf>, %53, %cst_17 [2] : vector<4x8x8xf32> to vector<4x8xf32>
    %55 = vector.shape_cast %54 : vector<4x8xf32> to vector<4x8x1xf32>
    %56 = vector.broadcast %55 : vector<4x8x1xf32> to vector<4x8x8xf32>
    %57 = arith.subf %53, %56 : vector<4x8x8xf32>
    %58 = math.exp %57 : vector<4x8x8xf32>
    %cst_18 = arith.constant dense<0.000000e+00> : vector<4x8xf32>
    %59 = vector.multi_reduction <add>, %58, %cst_18 [2] : vector<4x8x8xf32> to vector<4x8xf32>
    %60 = vector.shape_cast %59 : vector<4x8xf32> to vector<4x8x1xf32>
    %61 = tpu.reciprocal %60 {approx = true} : vector<4x8x1xf32> -> vector<4x8x1xf32>
    %62 = vector.broadcast %61 : vector<4x8x1xf32> to vector<4x8x8xf32>
    %63 = arith.mulf %58, %62 : vector<4x8x8xf32>
    "tpu.trace_start"() <{level = 10 : i32, message = "hqk,khd->qhd"}> : () -> ()
    %cst_19 = arith.constant dense<0.000000e+00> : vector<4x8x8xf32>
    %64 = tpu.matmul %44, %63, %cst_19 {dimension_numbers = #tpu.dot_dimension_numbers<[0], [2], [2], [1], [0, 1, 0, 2, 1, 1], [1], [0]>} : vector<8x4x8xf32>, vector<4x8x8xf32>, vector<4x8x8xf32> -> vector<4x8x8xf32>
    %65 = tpu.transpose %64, [2, 0, 1] : vector<4x8x8xf32> -> vector<8x4x8xf32>
    "tpu.trace_stop"() : () -> ()
    %66 = vector.shape_cast %65 : vector<8x4x8xf32> to vector<8x32xf32>
    %67 = arith.truncf %66 : vector<8x32xf32> to vector<8x32xbf16>
    %c0_20 = arith.constant 0 : index
    %c0_21 = arith.constant 0 : index
    %68 = vector.load %arg4[%c0_20, %c0_21] : memref<32x32xbf16, #tpu.memory_space<vmem>>, vector<32x32xbf16>
    %cst_22 = arith.constant dense<0.000000e+00> : vector<8x32xf32>
    %69 = tpu.matmul %67, %68, %cst_22 {dimension_numbers = #tpu.dot_dimension_numbers<[1], [0], [0], [1], [0, 0, 1, 1], [], []>} : vector<8x32xbf16>, vector<32x32xbf16>, vector<8x32xf32> -> vector<8x32xf32>
    %70 = vector.broadcast %9 : vector<1x32xf32> to vector<8x32xf32>
    %71 = arith.addf %69, %70 : vector<8x32xf32>
    %72 = arith.addf %71, %0 : vector<8x32xf32>
    %cst_23 = arith.constant dense<0.000000e+00> : vector<8xf32>
    %73 = vector.multi_reduction <add>, %72, %cst_23 [1] : vector<8x32xf32> to vector<8xf32>
    %74 = vector.shape_cast %73 : vector<8xf32> to vector<8x1xf32>
    %cst_24 = arith.constant 3.200000e+01 : f32
    %75 = vector.broadcast %cst_24 : f32 to vector<8x1xf32>
    %76 = arith.divf %74, %75 : vector<8x1xf32>
    %77 = vector.broadcast %76 : vector<8x1xf32> to vector<8x32xf32>
    %78 = arith.subf %72, %77 : vector<8x32xf32>
    %79 = arith.mulf %78, %78 : vector<8x32xf32>
    %cst_25 = arith.constant dense<0.000000e+00> : vector<8xf32>
    %80 = vector.multi_reduction <add>, %79, %cst_25 [1] : vector<8x32xf32> to vector<8xf32>
    %81 = vector.shape_cast %80 : vector<8xf32> to vector<8x1xf32>
    %cst_26 = arith.constant 3.200000e+01 : f32
    %82 = vector.broadcast %cst_26 : f32 to vector<8x1xf32>
    %83 = arith.divf %81, %82 : vector<8x1xf32>
    %84 = vector.broadcast %76 : vector<8x1xf32> to vector<8x32xf32>
    %85 = arith.subf %72, %84 : vector<8x32xf32>
    %cst_27 = arith.constant 9.99999997E-7 : f32
    %86 = vector.broadcast %cst_27 : f32 to vector<8x1xf32>
    %87 = arith.addf %83, %86 : vector<8x1xf32>
    %88 = math.rsqrt %87 : vector<8x1xf32>
    %89 = vector.broadcast %88 : vector<8x1xf32> to vector<8x32xf32>
    %90 = arith.mulf %85, %89 : vector<8x32xf32>
    %91 = vector.broadcast %6 : vector<1x32xf32> to vector<8x32xf32>
    %92 = arith.mulf %90, %91 : vector<8x32xf32>
    %93 = vector.broadcast %7 : vector<1x32xf32> to vector<8x32xf32>
    %94 = arith.addf %92, %93 : vector<8x32xf32>
    %95 = arith.truncf %94 : vector<8x32xf32> to vector<8x32xbf16>
    %c0_28 = arith.constant 0 : index
    %c0_29 = arith.constant 0 : index
    %96 = vector.load %arg5[%c0_28, %c0_29] : memref<32x64xbf16, #tpu.memory_space<vmem>>, vector<32x64xbf16>
    %cst_30 = arith.constant dense<0.000000e+00> : vector<8x64xf32>
    %97 = tpu.matmul %95, %96, %cst_30 {dimension_numbers = #tpu.dot_dimension_numbers<[1], [0], [0], [1], [0, 0, 1, 1], [], []>} : vector<8x32xbf16>, vector<32x64xbf16>, vector<8x64xf32> -> vector<8x64xf32>
    %98 = vector.broadcast %10 : vector<1x64xf32> to vector<8x64xf32>
    %99 = arith.addf %97, %98 : vector<8x64xf32>
    %cst_31 = arith.constant 0.000000e+00 : f32
    %100 = vector.broadcast %cst_31 : f32 to vector<8x64xf32>
    %101 = arith.maximumf %99, %100 : vector<8x64xf32>
    %102 = arith.truncf %101 : vector<8x64xf32> to vector<8x64xbf16>
    %c0_32 = arith.constant 0 : index
    %c0_33 = arith.constant 0 : index
    %103 = vector.load %arg6[%c0_32, %c0_33] : memref<64x32xbf16, #tpu.memory_space<vmem>>, vector<64x32xbf16>
    %cst_34 = arith.constant dense<0.000000e+00> : vector<8x32xf32>
    %104 = tpu.matmul %102, %103, %cst_34 {dimension_numbers = #tpu.dot_dimension_numbers<[1], [0], [0], [1], [0, 0, 1, 1], [], []>} : vector<8x64xbf16>, vector<64x32xbf16>, vector<8x32xf32> -> vector<8x32xf32>
    %105 = vector.broadcast %11 : vector<1x32xf32> to vector<8x32xf32>
    %106 = arith.addf %104, %105 : vector<8x32xf32>
    %107 = arith.addf %106, %72 : vector<8x32xf32>
    %c0_35 = arith.constant 0 : index
    %c0_36 = arith.constant 0 : index
    %108 = vector.load %arg8[%c0_35, %c0_36] : memref<8x32xf32, #tpu.memory_space<vmem>>, vector<8x32xf32>
    tpu.vector_store %arg8[%c0_35, %c0_36], %107 {strides = array<i32>} : memref<8x32xf32, #tpu.memory_space<vmem>>, vector<8x32xf32>,
    return
  }
  func.func @transform_0(%arg0: i32) -> (i32, i32) {
    %c0_i32 = arith.constant 0 : i32
    %c0_i32_0 = arith.constant 0 : i32
    return %arg0, %c0_i32 : i32, i32
  }
  func.func @transform_1(%arg0: i32) -> (i32, i32, i32) {
    %c0_i32 = arith.constant 0 : i32
    %c0_i32_0 = arith.constant 0 : i32
    %c0_i32_1 = arith.constant 0 : i32
    return %arg0, %c0_i32, %c0_i32_0 : i32, i32, i32
  }
  func.func @transform_2(%arg0: i32) -> (i32, i32) {
    %c0_i32 = arith.constant 0 : i32
    %c0_i32_0 = arith.constant 0 : i32
    %c0_i32_1 = arith.constant 0 : i32
    return %c0_i32, %c0_i32_0 : i32, i32
  }
  func.func @transform_3(%arg0: i32) -> (i32, i32) {
    %c0_i32 = arith.constant 0 : i32
    %c0_i32_0 = arith.constant 0 : i32
    %c0_i32_1 = arith.constant 0 : i32
    return %c0_i32, %c0_i32_0 : i32, i32
  }
  func.func @transform_4(%arg0: i32) -> (i32, i32) {
    %c0_i32 = arith.constant 0 : i32
    %c0_i32_0 = arith.constant 0 : i32
    %c0_i32_1 = arith.constant 0 : i32
    return %c0_i32, %c0_i32_0 : i32, i32
  }
  func.func @transform_5(%arg0: i32) -> (i32, i32) {
    %c0_i32 = arith.constant 0 : i32
    %c0_i32_0 = arith.constant 0 : i32
    %c0_i32_1 = arith.constant 0 : i32
    return %c0_i32, %c0_i32_0 : i32, i32
  }
  func.func @transform_6(%arg0: i32) -> (i32, i32) {
    %c0_i32 = arith.constant 0 : i32
    %c0_i32_0 = arith.constant 0 : i32
    %c0_i32_1 = arith.constant 0 : i32
    return %c0_i32, %c0_i32_0 : i32, i32
  }
  func.func @transform_7(%arg0: i32) -> (i32, i32) {
    %c0_i32 = arith.constant 0 : i32
    %c0_i32_0 = arith.constant 0 : i32
    return %arg0, %c0_i32 : i32, i32
  }
}

</mosaic_0001>

<llo_original>
// kernel: transformer_encoder_layer.1
$region0: #{transformer_encoder_layer.1}
  #allocation0 [shape = 'u32[]', space=smem, size = 0x4, offset = 0x4, fixed_abs, tag = 'smem constant byte address 0x4 - core index']
  #allocation1 [shape = 'u32[144,128]{1,0:T(1,128)}', space=vmem, size = 0x12000, scoped, tag = 'internal scratch']
  %s0 = inlined_call_operand.vmem [shape: f32[16,32], index: 0, kind: input, shape index: {}]
  %s1 = inlined_call_operand.hbm [shape: f32[2,1,8], index: 1, kind: input, shape index: {}]
  %s2 = inlined_call_operand.vmem [shape: bf16[32,96], index: 2, kind: input, shape index: {}]
  %s3 = inlined_call_operand.vmem [shape: bf16[32,32], index: 3, kind: input, shape index: {}]
  %s4 = inlined_call_operand.hbm [shape: bf16[32,64], index: 4, kind: input, shape index: {}]
  %s5 = inlined_call_operand.vmem [shape: bf16[64,32], index: 5, kind: input, shape index: {}]
  %s6 = inlined_call_operand.vmem [shape: f32[8,96], index: 6, kind: input, shape index: {}]
  %s7 = inlined_call_operand.hbm [shape: f32[16,32], index: 7, kind: output, shape index: {}]
  %s8 = sld [smem:[#allocation0]]
  $region69: #{transformer_encoder_layer.1} parent=0
    _
  %s10 = ssub.s32 1, %s8
  %s11 = scalar_select 0, %s10, %s8
  $region1: #{transformer_encoder_layer.1} parent=0
    #allocation2 [shape = 'u8[1024]{0}', space=vmem, size = 0x400, scoped, tag = 'input window, operand 1']
    #allocation3 [shape = 's32[2]{0}', space=sflag, size = 0x8, scoped, tag = 'scoped memory for transformer_encoder_layer.1']
    #allocation4 [shape = 's32[2]{0}', space=sflag, size = 0x8, scoped, tag = 'scoped memory for transformer_encoder_layer.1']
    #allocation5 [shape = 'u8[8192]{0}', space=vmem, size = 0x2000, scoped, tag = 'input window, operand 4, single buffered']
    #allocation6 [shape = 's32[1]{0}', space=sflag, size = 0x4, scoped, tag = 'scoped memory for transformer_encoder_layer.1']
    #allocation7 [shape = 'u8[8192]{0}', space=vmem, size = 0x2000, scoped, tag = 'output window, operand 0']
    %12 = vsyncpa [#allocation3], 0
    %s13 = scalar_lea.sflag [#allocation3], 1
    %14 = vsyncpa %s13, 0
    %15 = vsyncpa [#allocation6], 0
    %16 = vsyncpa [#allocation4], 0
    %s17 = scalar_lea.sflag [#allocation4], 1
    %18 = vsyncpa %s17, 0
    loop: start=0, step=1, limit=4
    $region2: #{transformer_encoder_layer.1} parent=1 // loop_pre_header
      _
    $region3: #{transformer_encoder_layer.1} parent=1 // loop_header
      %s20 = sphi 0, %s24
      %p21 = scmp.ge.s32.totalorder %s20, 4
      %s30 = sphi 0, %s32
      %s33 = sphi 0, %s30
      %s34 = sphi 0, %s33
      %s50 = sphi 0, %s34
      %s56 = sphi 0, %s58
      %s59 = sphi 0, %s56
      %s60 = sphi 0, %s59
      %s76 = sphi 0, %s60
      %s80 = sphi 0, %s80
      %s82 = sphi 0, %s80
      %s83 = sphi 0, %s82
      %s97 = sphi 0, %s83
      %s101 = sphi 0, %s101
      %s103 = sphi 0, %s101
      %s104 = sphi 0, %s103
      %s118 = sphi 0, %s104
      %s122 = sphi 0, %s122
      %s124 = sphi 0, %s122
      %s125 = sphi 0, %s124
      %s139 = sphi 0, %s125
      %s143 = sphi 0, %s143
      %s145 = sphi 0, %s143
      %s146 = sphi 0, %s145
      %s160 = sphi 0, %s146
      %s164 = sphi 0, %s164
      %s166 = sphi 0, %s164
      %s167 = sphi 0, %s166
      %s181 = sphi 0, %s167
      %s187 = sphi 0, %s189
      %s190 = sphi 0, %s187
      %s191 = sphi 0, %s190
      %s207 = sphi 0, %s191
    $region4: #{transformer_encoder_layer.1} parent=1 // loop_header_branch
      %23 = sbr.rel (%p21) target = $region8
    $region5: #{transformer_encoder_layer.1} parent=1 // loop_body
      %s25 = ssub.s32 %s20, 1
      %s26 = ssub.s32 %s20, 2
      %s27 = sadd.s32 %s20, 1
      %s28 = ssub.s32 %s20, %s27
      %p29 = scmp.eq.s32.totalorder %s28, 0
      %s31 = sadd.s32 %s30, 1
      %s32 = scalar_select %p29, %s30, %s31
      %p35 = pneg %p29
      %p36 = scmp.eq.s32.totalorder %s20, 1
      %p37 = por %p35, %p36
      %p38 = scmp.ne.s32.totalorder %s30, %s33
      %p39 = scmp.eq.s32.totalorder %s20, 0
      %p40 = por %p38, %p39
      %p41 = scmp.ne.s32.totalorder %s30, %s33
      %p42 = scmp.eq.s32.totalorder %s25, 1
      %p43 = por %p41, %p42
      %p44 = scmp.ne.s32.totalorder %s33, %s34
      %p45 = scmp.eq.s32.totalorder %s25, 0
      %p46 = por %p44, %p45
      %p47 = scmp.ne.s32.totalorder %s33, %s34
      %p48 = scmp.eq.s32.totalorder %s26, 1
      %p49 = por %p47, %p48
      %p51 = scmp.ne.s32.totalorder %s34, %s50
      %p52 = scmp.eq.s32.totalorder %s26, 0
      %p53 = por %p51, %p52
      %s54 = ssub.s32 %s20, %s27
      %p55 = scmp.eq.s32.totalorder %s54, 0
      %s57 = sadd.s32 %s56, 1
      %s58 = scalar_select %p55, %s56, %s57
      %p61 = pneg %p55
      %p62 = scmp.eq.s32.totalorder %s20, 1
      %p63 = por %p61, %p62
      %p64 = scmp.ne.s32.totalorder %s56, %s59
      %p65 = scmp.eq.s32.totalorder %s20, 0
      %p66 = por %p64, %p65
      %p67 = scmp.ne.s32.totalorder %s56, %s59
      %p68 = scmp.eq.s32.totalorder %s25, 1
      %p69 = por %p67, %p68
      %p70 = scmp.ne.s32.totalorder %s59, %s60
      %p71 = scmp.eq.s32.totalorder %s25, 0
      %p72 = por %p70, %p71
      %p73 = scmp.ne.s32.totalorder %s59, %s60
      %p74 = scmp.eq.s32.totalorder %s26, 1
      %p75 = por %p73, %p74
      %p77 = scmp.ne.s32.totalorder %s60, %s76
      %p78 = scmp.eq.s32.totalorder %s26, 0
      %p79 = por %p77, %p78
      %s81 = sadd.s32 %s80, 1
      %p84 = scmp.eq.s32.totalorder %s20, 1
      %p85 = scmp.ne.s32.totalorder %s80, %s82
      %p86 = scmp.eq.s32.totalorder %s20, 0
      %p87 = por %p85, %p86
      %p88 = scmp.ne.s32.totalorder %s80, %s82
      %p89 = scmp.eq.s32.totalorder %s25, 1
      %p90 = por %p88, %p89
      %p91 = scmp.ne.s32.totalorder %s82, %s83
      %p92 = scmp.eq.s32.totalorder %s25, 0
      %p93 = por %p91, %p92
      %p94 = scmp.ne.s32.totalorder %s82, %s83
      %p95 = scmp.eq.s32.totalorder %s26, 1
      %p96 = por %p94, %p95
      %p98 = scmp.ne.s32.totalorder %s83, %s97
      %p99 = scmp.eq.s32.totalorder %s26, 0
      %p100 = por %p98, %p99
      %s102 = sadd.s32 %s101, 1
      %p105 = scmp.eq.s32.totalorder %s20, 1
      %p106 = scmp.ne.s32.totalorder %s101, %s103
      %p107 = scmp.eq.s32.totalorder %s20, 0
      %p108 = por %p106, %p107
      %p109 = scmp.ne.s32.totalorder %s101, %s103
      %p110 = scmp.eq.s32.totalorder %s25, 1
      %p111 = por %p109, %p110
      %p112 = scmp.ne.s32.totalorder %s103, %s104
      %p113 = scmp.eq.s32.totalorder %s25, 0
      %p114 = por %p112, %p113
      %p115 = scmp.ne.s32.totalorder %s103, %s104
      %p116 = scmp.eq.s32.totalorder %s26, 1
      %p117 = por %p115, %p116
      %p119 = scmp.ne.s32.totalorder %s104, %s118
      %p120 = scmp.eq.s32.totalorder %s26, 0
      %p121 = por %p119, %p120
      %s123 = sadd.s32 %s122, 1
      %p126 = scmp.eq.s32.totalorder %s20, 1
      %p127 = scmp.ne.s32.totalorder %s122, %s124
      %p128 = scmp.eq.s32.totalorder %s20, 0
      %p129 = por %p127, %p128
      %p130 = scmp.ne.s32.totalorder %s122, %s124
      %p131 = scmp.eq.s32.totalorder %s25, 1
      %p132 = por %p130, %p131
      %p133 = scmp.ne.s32.totalorder %s124, %s125
      %p134 = scmp.eq.s32.totalorder %s25, 0
      %p135 = por %p133, %p134
      %p136 = scmp.ne.s32.totalorder %s124, %s125
      %p137 = scmp.eq.s32.totalorder %s26, 1
      %p138 = por %p136, %p137
      %p140 = scmp.ne.s32.totalorder %s125, %s139
      %p141 = scmp.eq.s32.totalorder %s26, 0
      %p142 = por %p140, %p141
      %s144 = sadd.s32 %s143, 1
      %p147 = scmp.eq.s32.totalorder %s20, 1
      %p148 = scmp.ne.s32.totalorder %s143, %s145
      %p149 = scmp.eq.s32.totalorder %s20, 0
      %p150 = por %p148, %p149
      %p151 = scmp.ne.s32.totalorder %s143, %s145
      %p152 = scmp.eq.s32.totalorder %s25, 1
      %p153 = por %p151, %p152
      %p154 = scmp.ne.s32.totalorder %s145, %s146
      %p155 = scmp.eq.s32.totalorder %s25, 0
      %p156 = por %p154, %p155
      %p157 = scmp.ne.s32.totalorder %s145, %s146
      %p158 = scmp.eq.s32.totalorder %s26, 1
      %p159 = por %p157, %p158
      %p161 = scmp.ne.s32.totalorder %s146, %s160
      %p162 = scmp.eq.s32.totalorder %s26, 0
      %p163 = por %p161, %p162
      %s165 = sadd.s32 %s164, 1
      %p168 = scmp.eq.s32.totalorder %s20, 1
      %p169 = scmp.ne.s32.totalorder %s164, %s166
      %p170 = scmp.eq.s32.totalorder %s20, 0
      %p171 = por %p169, %p170
      %p172 = scmp.ne.s32.totalorder %s164, %s166
      %p173 = scmp.eq.s32.totalorder %s25, 1
      %p174 = por %p172, %p173
      %p175 = scmp.ne.s32.totalorder %s166, %s167
      %p176 = scmp.eq.s32.totalorder %s25, 0
      %p177 = por %p175, %p176
      %p178 = scmp.ne.s32.totalorder %s166, %s167
      %p179 = scmp.eq.s32.totalorder %s26, 1
      %p180 = por %p178, %p179
      %p182 = scmp.ne.s32.totalorder %s167, %s181
      %p183 = scmp.eq.s32.totalorder %s26, 0
      %p184 = por %p182, %p183
      %s185 = ssub.s32 %s20, %s27
      %p186 = scmp.eq.s32.totalorder %s185, 0
      %s188 = sadd.s32 %s187, 1
      %s189 = scalar_select %p186, %s187, %s188
      %p192 = pneg %p186
      %p193 = scmp.eq.s32.totalorder %s20, 1
      %p194 = por %p192, %p193
      %p195 = scmp.ne.s32.totalorder %s187, %s190
      %p196 = scmp.eq.s32.totalorder %s20, 0
      %p197 = por %p195, %p196
      %p198 = scmp.ne.s32.totalorder %s187, %s190
      %p199 = scmp.eq.s32.totalorder %s25, 1
      %p200 = por %p198, %p199
      %p201 = scmp.ne.s32.totalorder %s190, %s191
      %p202 = scmp.eq.s32.totalorder %s25, 0
      %p203 = por %p201, %p202
      %p204 = scmp.ne.s32.totalorder %s190, %s191
      %p205 = scmp.eq.s32.totalorder %s26, 1
      %p206 = por %p204, %p205
      %p208 = scmp.ne.s32.totalorder %s191, %s207
      %p209 = scmp.eq.s32.totalorder %s26, 0
      %p210 = por %p208, %p209
      %p211 = scmp.le.s32.totalorder 1, %s20
      %p212 = scmp.lt.s32.totalorder %s20, 3
      %p213 = pnand %p211, %p212
      %p214 = pneg %p213
      // Predicated region
      $region9: #{transformer_encoder_layer.1} parent=5 // pred_check
        _
      $region10: #{transformer_encoder_layer.1} parent=5 // pred_check_branch
        %216 = sbr.rel (%p213) target = $region12
      $region11: #{transformer_encoder_layer.1} parent=5 // pred_region
        %s217 = ssub.s32 %s20, 1
        // Predicated region
        $region13: #{transformer_encoder_layer.1} parent=11 // pred_check
          %p218 = pneg %p93
        $region14: #{transformer_encoder_layer.1} parent=11 // pred_check_branch
          %220 = sbr.rel (%p218) target = $region16
        $region15: #{transformer_encoder_layer.1} parent=11 // pred_region
          _
        $region16: #{transformer_encoder_layer.1} parent=11 // pred_fallthru
          _
        // Predicated region
        $region17: #{transformer_encoder_layer.1} parent=11 // pred_check
          %p221 = pneg %p114
        $region18: #{transformer_encoder_layer.1} parent=11 // pred_check_branch
          %223 = sbr.rel (%p221) target = $region20
        $region19: #{transformer_encoder_layer.1} parent=11 // pred_region
          _
        $region20: #{transformer_encoder_layer.1} parent=11 // pred_fallthru
          _
        // Predicated region
        $region21: #{transformer_encoder_layer.1} parent=11 // pred_check
          %p224 = pneg %p135
        $region22: #{transformer_encoder_layer.1} parent=11 // pred_check_branch
          %226 = sbr.rel (%p224) target = $region24
        $region23: #{transformer_encoder_layer.1} parent=11 // pred_region
          %s228 = ssub.s32 256, 256
          %229 = vsyncadd [#allocation6], %s228
          %s230 = sshll.u32 [#allocation5], 4
          %s231 = int_to_ptr.vmem [resolvable:$true] %s230
          %236 = dma.hbm_to_vmem [thread:$0]  %s4, 256, %s231, [#allocation6], 64, 64, 4
        $region24: #{transformer_encoder_layer.1} parent=11 // pred_fallthru
          _
        // Predicated region
        $region25: #{transformer_encoder_layer.1} parent=11 // pred_check
          %p237 = pneg %p156
        $region26: #{transformer_encoder_layer.1} parent=11 // pred_check_branch
          %239 = sbr.rel (%p237) target = $region28
        $region27: #{transformer_encoder_layer.1} parent=11 // pred_region
          _
        $region28: #{transformer_encoder_layer.1} parent=11 // pred_fallthru
          _
        // Predicated region
        $region29: #{transformer_encoder_layer.1} parent=11 // pred_check
          %p240 = pneg %p177
        $region30: #{transformer_encoder_layer.1} parent=11 // pred_check_branch
          %242 = sbr.rel (%p240) target = $region32
        $region31: #{transformer_encoder_layer.1} parent=11 // pred_region
          _
        $region32: #{transformer_encoder_layer.1} parent=11 // pred_fallthru
          _
      $region12: #{transformer_encoder_layer.1} parent=5 // pred_fallthru
        _
      %p243 = scmp.lt.s32.totalorder %s20, 2
      // Predicated region
      $region33: #{transformer_encoder_layer.1} parent=5 // pred_check
        %p244 = pneg %p243
      $region34: #{transformer_encoder_layer.1} parent=5 // pred_check_branch
        %246 = sbr.rel (%p244) target = $region36
      $region35: #{transformer_encoder_layer.1} parent=5 // pred_region
        // Predicated region
        $region37: #{transformer_encoder_layer.1} parent=35 // pred_check
          %p247 = pneg %p40
        $region38: #{transformer_encoder_layer.1} parent=35 // pred_check_branch
          %249 = sbr.rel (%p247) target = $region40
        $region39: #{transformer_encoder_layer.1} parent=35 // pred_region
          %p250 = scmp.lt.s32.totalorder %s20, 1
          %s251 = scalar_select %p250, %s20, 1
          %s252 = smul.addr %s251, 8
          %s253 = scalar_lea.vmem %s0, %s252
        $region40: #{transformer_encoder_layer.1} parent=35 // pred_fallthru
          _
        // Predicated region
        $region41: #{transformer_encoder_layer.1} parent=35 // pred_check
          %p254 = pneg %p66
        $region42: #{transformer_encoder_layer.1} parent=35 // pred_check_branch
          %256 = sbr.rel (%p254) target = $region44
        $region43: #{transformer_encoder_layer.1} parent=35 // pred_region
          %s257 = sand.u32 %s56, 1
          %s258 = scalar_lea.sflag [#allocation3], %s257
          %s259 = sand.u32 %s56, 1
          %s260 = scalar_lea.vmem [#allocation2], %s259
          %s262 = ssub.s32 16, 16
          %263 = vsyncadd %s258, %s262
          %s264 = smul.addr %s20, 16
          %s265 = scalar_lea.hbm %s1, %s264
          %s267 = sshll.u32 %s260, 4
          %s268 = int_to_ptr.vmem [resolvable:$true] %s267
          %270 = dma.hbm_to_vmem [thread:$0]  %s265, 16, %s268, %s258
        $region44: #{transformer_encoder_layer.1} parent=35 // pred_fallthru
          _
      $region36: #{transformer_encoder_layer.1} parent=5 // pred_fallthru
        _
      %p271 = scmp.le.s32.totalorder 1, %s20
      %p272 = scmp.lt.s32.totalorder %s20, 3
      %p273 = pnand %p271, %p272
      %p274 = pneg %p273
      // Predicated region
      $region45: #{transformer_encoder_layer.1} parent=5 // pred_check
        _
      $region46: #{transformer_encoder_layer.1} parent=5 // pred_check_branch
        %276 = sbr.rel (%p273) target = $region48
      $region47: #{transformer_encoder_layer.1} parent=5 // pred_region
        %s277 = ssub.s32 %s20, 1
        %s278 = sand.u32 %s59, 1
        %s279 = scalar_lea.sflag [#allocation3], %s278
        %s280 = sand.u32 %s59, 1
        %s281 = scalar_lea.vmem [#allocation2], %s280
        // Predicated region
        $region49: #{transformer_encoder_layer.1} parent=47 // pred_check
          %p282 = pneg %p72
        $region50: #{transformer_encoder_layer.1} parent=47 // pred_check_branch
          %284 = sbr.rel (%p282) target = $region52
        $region51: #{transformer_encoder_layer.1} parent=47 // pred_region
          %285 = dma.done %s279, 16
        $region52: #{transformer_encoder_layer.1} parent=47 // pred_fallthru
          _
        // Predicated region
        $region53: #{transformer_encoder_layer.1} parent=47 // pred_check
          %p286 = pneg %p135
        $region54: #{transformer_encoder_layer.1} parent=47 // pred_check_branch
          %288 = sbr.rel (%p286) target = $region56
        $region55: #{transformer_encoder_layer.1} parent=47 // pred_region
          %289 = dma.done [#allocation6], 256
        $region56: #{transformer_encoder_layer.1} parent=47 // pred_fallthru
          _
        %p290 = scmp.lt.s32.totalorder %s25, 1
        %s291 = scalar_select %p290, %s25, 1
        %s292 = smul.addr %s291, 8
        %s293 = scalar_lea.vmem %s0, %s292
        %p294 = pneg %p46
        %p295 = pneg %p43
        %s296 = sand.u32 %s59, 1
        %s297 = scalar_lea.sflag [#allocation3], %s296
        %s298 = sand.u32 %s59, 1
        %s299 = scalar_lea.vmem [#allocation2], %s298
        %p300 = pneg %p72
        %p301 = pneg %p69
        %p302 = pneg %p93
        %p303 = pneg %p90
        %p304 = pneg %p114
        %p305 = pneg %p111
        %p306 = pneg %p135
        %p307 = pneg %p132
        %p308 = pneg %p156
        %p309 = pneg %p153
        %p310 = pneg %p177
        %p311 = pneg %p174
        %p312 = pneg %p203
        %p313 = pneg %p200
        %s314 = sand.u32 %s190, 1
        %s315 = scalar_lea.sflag [#allocation4], %s314
        %s316 = sand.u32 %s190, 1
        %s317 = smul.addr %s316, 8
        %s318 = scalar_lea.vmem [#allocation7], %s317
        %p319 = scmp.lt.s32.totalorder %s25, 1
        %s320 = scalar_select %p319, %s25, 1
        %s321 = smul.addr %s320, 8
        %s322 = scalar_lea.vmem %s0, %s321
        %v324 = vld [vmem:[%s322] sm:$0xff]
        %v325 = vld [vmem:[%s281] sm:$0x1]
        %v326 = vld [vmem:[%s6] sm:$0xff]
        %vm327 = vcmask 261120
        %v328 = vsel %vm327, %v324, 0.0
        %329 = vadd.xlane.f32.xlu0 %v328
        %v330 = vpop.xlane.xlu0 %329
        %v331 = vrcp.pop 32.0
        %v332 = vmul.f32 %v330, %v331
        %v333 = vsub.f32 %v324, %v332
        %v334 = vmul.f32 %v333, %v333
        %v335 = vsel %vm327, %v334, 0.0
        %336 = vadd.xlane.f32.xlu0 %v335
        %v337 = vpop.xlane.xlu0 %336
        %v338 = vmul.f32 %v337, %v331
        %v339 = vadd.f32 %v338, 1e-06
        %v340 = vrsqrt.pop %v339
        %v341 = vmul.f32 %v333, %v340
        %v342 = vlaneseq
        %v343 = vshrl.u32 %v342, 7
        %v344 = vsub.s32 0, %v343
        %v345 = vrot.slane %v326, %v344
        %v346 = vmul.f32 %v341, %v345
        %v347 = vlaneseq
        %v348 = vshrl.u32 %v347, 7
        %v349 = vsub.s32 1, %v348
        %v350 = vrot.slane %v326, %v349
        %v351 = vadd.f32 %v346, %v350
        %v352 = vpack.c.bf16 %v351, %v351
        %v353 = vld [vmem:[%s2] sm:$0xf]
        %v354 = vld [vmem:[%s2 + $0x4] sm:$0xf]
        %v355 = vld [vmem:[%s2 + $0x8] sm:$0xf]
        %v356 = vld [vmem:[%s2 + $0xc] sm:$0xf]
        %v357 = vlaneseq
        %v358 = vshrl.u32 %v357, 7
        %v359 = vsub.s32 4, %v358
        %v360 = vrot.slane %v326, %v359
        %v365 = vunpack.c.l.b16 %v353
        %v366 = vunpack.c.l.b16 %v354
        %v367 = vunpack.c.l.b16 %v355
        %v368 = vunpack.c.l.b16 %v356
        %v369 = vpack.c.b16 %v366, %v365
        %v370 = vpack.c.b16 %v368, %v367
        %v374 = vsel %vm327, %v352, 0
        %376 = vmatprep.subr.bf16.mxu0 0
        %377 = vmatpush1.bf16.msra.mxu0 0
        %378 = vmatprep.subr.bf16.mxu0 0
        %379 = vmatpush1.bf16.msra.mxu0 0
        %380 = vmatprep.subr.bf16.mxu0 0
        %381 = vmatpush1.bf16.msra.mxu0 0
        %382 = vmatprep.subr.bf16.mxu0 0
        %383 = vmatpush1.bf16.msra.mxu0 0
        %384 = vmatprep.subr.bf16.mxu0 0
        %385 = vmatpush1.bf16.msra.mxu0 0
        %386 = vmatprep.subr.bf16.mxu0 0
        %387 = vmatpush1.bf16.msra.mxu0 0
        %388 = vmatprep.subr.bf16.mxu0 0
        %389 = vmatpush1.bf16.msra.mxu0 %v370
        %390 = vmatprep.subr.bf16.mxu0 0
        %391 = vmatpush1.bf16.msra.mxu0 %v369
        %392 = vmatprep.subr.bf16.mxu0 0
        %393 = vmatpush2.bf16.msra.mxu0 0
        %394 = vmatprep.subr.bf16.mxu0 0
        %395 = vmatpush2.bf16.msra.mxu0 0
        %396 = vmatprep.subr.bf16.mxu0 0
        %397 = vmatpush2.bf16.msra.mxu0 0
        %398 = vmatprep.subr.bf16.mxu0 0
        %399 = vmatpush2.bf16.msra.mxu0 0
        %400 = vmatprep.subr.bf16.mxu0 0
        %401 = vmatpush2.bf16.msra.mxu0 0
        %402 = vmatprep.subr.bf16.mxu0 0
        %403 = vmatpush2.bf16.msra.mxu0 0
        %404 = vmatprep.subr.bf16.mxu0 0
        %405 = vmatpush2.bf16.msra.mxu0 0
        %406 = vmatprep.subr.bf16.mxu0 0
        %407 = vmatpush2.bf16.msra.mxu0 0
        %408 = vmatprep.mubr.bf16.mxu0 0
        %409 = vmatmul.mubr.bf16.gmra.mxu0 %v374
        %v410 = vpop.f32.mrf.mxu0
        %v411 = vadd.f32 %v360, %v410
        %v412 = vpop.f32.mrf.mxu0
        %v413 = vpop.f32.mrf.mxu0
        %v414 = vpop.f32.mrf.mxu0
        %415 = vdwg.mxu0
        %417 = vrot.lane.b32.xlu0 %v411, 120
        %v418 = vpop.permute.xlu0 %417
        %419 = vrot.lane.b32.xlu0 %v411, 112
        %v420 = vpop.permute.xlu0 %419
        %421 = vrot.lane.b32.xlu0 %v411, 104
        %v422 = vpop.permute.xlu0 %421
        %vm423 = vcmp.gt.f32.partialorder %v325, 0.0
        %v424 = vsel %vm423, 0.0, -1e+30
        %v426 = vlaneseq
        %v427 = vshrl.u32 %v426, 7
        %v428 = vsub.s32 0, %v427
        %v429 = vrot.slane %v424, %v428
        %431 = vrot.lane.b32.xlu0 %v411, 96
        %v432 = vpop.permute.xlu0 %431
        %433 = vrot.lane.b32.xlu0 %v418, 96
        %v434 = vpop.permute.xlu0 %433
        %435 = vrot.lane.b32.xlu0 %v420, 96
        %v436 = vpop.permute.xlu0 %435
        %437 = vrot.lane.b32.xlu0 %v422, 96
        %v438 = vpop.permute.xlu0 %437
        %443 = vxpose.xlu0.b32.start [1/16] %v432, 128
        %444 = vxpose.xlu0.b32.cont [2/16] 0.0, 128
        %445 = vxpose.xlu0.b32.cont [3/16] 0.0, 128
        %446 = vxpose.xlu0.b32.cont [4/16] 0.0, 128
        %447 = vxpose.xlu0.b32.cont [5/16] 0.0, 128
        %448 = vxpose.xlu0.b32.cont [6/16] 0.0, 128
        %449 = vxpose.xlu0.b32.cont [7/16] 0.0, 128
        %450 = vxpose.xlu0.b32.cont [8/16] 0.0, 128
        %451 = vxpose.xlu0.b32.cont [9/16] 0.0, 128
        %452 = vxpose.xlu0.b32.cont [10/16] 0.0, 128
        %453 = vxpose.xlu0.b32.cont [11/16] 0.0, 128
        %454 = vxpose.xlu0.b32.cont [12/16] 0.0, 128
        %455 = vxpose.xlu0.b32.cont [13/16] 0.0, 128
        %456 = vxpose.xlu0.b32.cont [14/16] 0.0, 128
        %457 = vxpose.xlu0.b32.cont [15/16] 0.0, 128
        %458 = vxpose.xlu0.b32.end [16/16] 0.0, 128
        %v459 = vpop.trf.xlu0
        %v460 = vpop.trf.xlu0
        %v461 = vpop.trf.xlu0
        %v462 = vpop.trf.xlu0
        %v463 = vpop.trf.xlu0
        %v464 = vpop.trf.xlu0
        %v465 = vpop.trf.xlu0
        %v466 = vpop.trf.xlu0
        %v467 = vpop.trf.xlu0
        %v468 = vpop.trf.xlu0
        %v469 = vpop.trf.xlu0
        %v470 = vpop.trf.xlu0
        %v471 = vpop.trf.xlu0
        %v472 = vpop.trf.xlu0
        %v473 = vpop.trf.xlu0
        %v474 = vpop.trf.xlu0
        %475 = vxpose.xlu0.b32.start [1/16] %v434, 128
        %476 = vxpose.xlu0.b32.cont [2/16] 0.0, 128
        %477 = vxpose.xlu0.b32.cont [3/16] 0.0, 128
        %478 = vxpose.xlu0.b32.cont [4/16] 0.0, 128
        %479 = vxpose.xlu0.b32.cont [5/16] 0.0, 128
        %480 = vxpose.xlu0.b32.cont [6/16] 0.0, 128
        %481 = vxpose.xlu0.b32.cont [7/16] 0.0, 128
        %482 = vxpose.xlu0.b32.cont [8/16] 0.0, 128
        %483 = vxpose.xlu0.b32.cont [9/16] 0.0, 128
        %484 = vxpose.xlu0.b32.cont [10/16] 0.0, 128
        %485 = vxpose.xlu0.b32.cont [11/16] 0.0, 128
        %486 = vxpose.xlu0.b32.cont [12/16] 0.0, 128
        %487 = vxpose.xlu0.b32.cont [13/16] 0.0, 128
        %488 = vxpose.xlu0.b32.cont [14/16] 0.0, 128
        %489 = vxpose.xlu0.b32.cont [15/16] 0.0, 128
        %490 = vxpose.xlu0.b32.end [16/16] 0.0, 128
        %v491 = vpop.trf.xlu0
        %v492 = vpop.trf.xlu0
        %v493 = vpop.trf.xlu0
        %v494 = vpop.trf.xlu0
        %v495 = vpop.trf.xlu0
        %v496 = vpop.trf.xlu0
        %v497 = vpop.trf.xlu0
        %v498 = vpop.trf.xlu0
        %v499 = vpop.trf.xlu0
        %v500 = vpop.trf.xlu0
        %v501 = vpop.trf.xlu0
        %v502 = vpop.trf.xlu0
        %v503 = vpop.trf.xlu0
        %v504 = vpop.trf.xlu0
        %v505 = vpop.trf.xlu0
        %v506 = vpop.trf.xlu0
        %507 = vxpose.xlu0.b32.start [1/16] %v436, 128
        %508 = vxpose.xlu0.b32.cont [2/16] 0.0, 128
        %509 = vxpose.xlu0.b32.cont [3/16] 0.0, 128
        %510 = vxpose.xlu0.b32.cont [4/16] 0.0, 128
        %511 = vxpose.xlu0.b32.cont [5/16] 0.0, 128
        %512 = vxpose.xlu0.b32.cont [6/16] 0.0, 128
        %513 = vxpose.xlu0.b32.cont [7/16] 0.0, 128
        %514 = vxpose.xlu0.b32.cont [8/16] 0.0, 128
        %515 = vxpose.xlu0.b32.cont [9/16] 0.0, 128
        %516 = vxpose.xlu0.b32.cont [10/16] 0.0, 128
        %517 = vxpose.xlu0.b32.cont [11/16] 0.0, 128
        %518 = vxpose.xlu0.b32.cont [12/16] 0.0, 128
        %519 = vxpose.xlu0.b32.cont [13/16] 0.0, 128
        %520 = vxpose.xlu0.b32.cont [14/16] 0.0, 128
        %521 = vxpose.xlu0.b32.cont [15/16] 0.0, 128
        %522 = vxpose.xlu0.b32.end [16/16] 0.0, 128
        %v523 = vpop.trf.xlu0
        %v524 = vpop.trf.xlu0
        %v525 = vpop.trf.xlu0
        %v526 = vpop.trf.xlu0
        %v527 = vpop.trf.xlu0
        %v528 = vpop.trf.xlu0
        %v529 = vpop.trf.xlu0
        %v530 = vpop.trf.xlu0
        %v531 = vpop.trf.xlu0
        %v532 = vpop.trf.xlu0
        %v533 = vpop.trf.xlu0
        %v534 = vpop.trf.xlu0
        %v535 = vpop.trf.xlu0
        %v536 = vpop.trf.xlu0
        %v537 = vpop.trf.xlu0
        %v538 = vpop.trf.xlu0
        %539 = vxpose.xlu0.b32.start [1/16] %v438, 128
        %540 = vxpose.xlu0.b32.cont [2/16] 0.0, 128
        %541 = vxpose.xlu0.b32.cont [3/16] 0.0, 128
        %542 = vxpose.xlu0.b32.cont [4/16] 0.0, 128
        %543 = vxpose.xlu0.b32.cont [5/16] 0.0, 128
        %544 = vxpose.xlu0.b32.cont [6/16] 0.0, 128
        %545 = vxpose.xlu0.b32.cont [7/16] 0.0, 128
        %546 = vxpose.xlu0.b32.cont [8/16] 0.0, 128
        %547 = vxpose.xlu0.b32.cont [9/16] 0.0, 128
        %548 = vxpose.xlu0.b32.cont [10/16] 0.0, 128
        %549 = vxpose.xlu0.b32.cont [11/16] 0.0, 128
        %550 = vxpose.xlu0.b32.cont [12/16] 0.0, 128
        %551 = vxpose.xlu0.b32.cont [13/16] 0.0, 128
        %552 = vxpose.xlu0.b32.cont [14/16] 0.0, 128
        %553 = vxpose.xlu0.b32.cont [15/16] 0.0, 128
        %554 = vxpose.xlu0.b32.end [16/16] 0.0, 128
        %v555 = vpop.trf.xlu0
        %v556 = vpop.trf.xlu0
        %v557 = vpop.trf.xlu0
        %v558 = vpop.trf.xlu0
        %v559 = vpop.trf.xlu0
        %v560 = vpop.trf.xlu0
        %v561 = vpop.trf.xlu0
        %v562 = vpop.trf.xlu0
        %v563 = vpop.trf.xlu0
        %v564 = vpop.trf.xlu0
        %v565 = vpop.trf.xlu0
        %v566 = vpop.trf.xlu0
        %v567 = vpop.trf.xlu0
        %v568 = vpop.trf.xlu0
        %v569 = vpop.trf.xlu0
        %v570 = vpop.trf.xlu0
        %vm571 = vcmask 64512
        %v572 = vsel %vm571, %v411, 0
        %574 = vmatprep.subr.mxu0 0.0
        %575 = vmatpush1.msra.mxu0 0.0
        %576 = vmatprep.subr.mxu0 0.0
        %577 = vmatpush1.msra.mxu0 0.0
        %578 = vmatprep.subr.mxu0 0.0
        %579 = vmatpush1.msra.mxu0 0.0
        %580 = vmatprep.subr.mxu0 0.0
        %581 = vmatpush1.msra.mxu0 0.0
        %582 = vmatprep.subr.mxu0 0.0
        %583 = vmatpush1.msra.mxu0 0.0
        %584 = vmatprep.subr.mxu0 0.0
        %585 = vmatpush1.msra.mxu0 0.0
        %586 = vmatprep.subr.mxu0 0.0
        %587 = vmatpush1.msra.mxu0 0.0
        %588 = vmatprep.subr.mxu0 0.0
        %589 = vmatpush1.msra.mxu0 0.0
        %590 = vmatprep.subr.mxu0 0.0
        %591 = vmatpush1.msra.mxu0 0.0
        %592 = vmatprep.subr.mxu0 0.0
        %593 = vmatpush1.msra.mxu0 0.0
        %594 = vmatprep.subr.mxu0 0.0
        %595 = vmatpush1.msra.mxu0 0.0
        %596 = vmatprep.subr.mxu0 0.0
        %597 = vmatpush1.msra.mxu0 0.0
        %598 = vmatprep.subr.mxu0 0.0
        %599 = vmatpush1.msra.mxu0 0.0
        %600 = vmatprep.subr.mxu0 0.0
        %601 = vmatpush1.msra.mxu0 0.0
        %602 = vmatprep.subr.mxu0 0.0
        %603 = vmatpush1.msra.mxu0 0.0
        %604 = vmatprep.subr.mxu0 0.0
        %605 = vmatpush1.msra.mxu0 %v459
        %606 = vmatprep.subr.mxu0 0.0
        %607 = vmatpush2.msra.mxu0 0.0
        %608 = vmatprep.subr.mxu0 0.0
        %609 = vmatpush2.msra.mxu0 0.0
        %610 = vmatprep.subr.mxu0 0.0
        %611 = vmatpush2.msra.mxu0 0.0
        %612 = vmatprep.subr.mxu0 0.0
        %613 = vmatpush2.msra.mxu0 0.0
        %614 = vmatprep.subr.mxu0 0.0
        %615 = vmatpush2.msra.mxu0 0.0
        %616 = vmatprep.subr.mxu0 0.0
        %617 = vmatpush2.msra.mxu0 0.0
        %618 = vmatprep.subr.mxu0 0.0
        %619 = vmatpush2.msra.mxu0 0.0
        %620 = vmatprep.subr.mxu0 0.0
        %621 = vmatpush2.msra.mxu0 0.0
        %622 = vmatprep.subr.mxu0 0.0
        %623 = vmatpush2.msra.mxu0 0.0
        %624 = vmatprep.subr.mxu0 0.0
        %625 = vmatpush2.msra.mxu0 0.0
        %626 = vmatprep.subr.mxu0 0.0
        %627 = vmatpush2.msra.mxu0 0.0
        %628 = vmatprep.subr.mxu0 0.0
        %629 = vmatpush2.msra.mxu0 0.0
        %630 = vmatprep.subr.mxu0 0.0
        %631 = vmatpush2.msra.mxu0 0.0
        %632 = vmatprep.subr.mxu0 0.0
        %633 = vmatpush2.msra.mxu0 0.0
        %634 = vmatprep.subr.mxu0 0.0
        %635 = vmatpush2.msra.mxu0 0.0
        %636 = vmatprep.subr.mxu0 0.0
        %637 = vmatpush2.msra.mxu0 0.0
        %638 = vmatprep.mubr.f32.mxu0 0.0
        %639 = vmatmul.mubr.f32.gmra.mxu0 %v572
        %v640 = vpop.f32.mrf.mxu0
        %v641 = vadd.f32 %v429, %v640
        %v642 = vpop.f32.mrf.mxu0
        %643 = vdwg.mxu0
        %v644 = vsel %vm571, %v418, 0
        %646 = vmatprep.subr.mxu0 0.0
        %647 = vmatpush1.msra.mxu0 0.0
        %648 = vmatprep.subr.mxu0 0.0
        %649 = vmatpush1.msra.mxu0 0.0
        %650 = vmatprep.subr.mxu0 0.0
        %651 = vmatpush1.msra.mxu0 0.0
        %652 = vmatprep.subr.mxu0 0.0
        %653 = vmatpush1.msra.mxu0 0.0
        %654 = vmatprep.subr.mxu0 0.0
        %655 = vmatpush1.msra.mxu0 0.0
        %656 = vmatprep.subr.mxu0 0.0
        %657 = vmatpush1.msra.mxu0 0.0
        %658 = vmatprep.subr.mxu0 0.0
        %659 = vmatpush1.msra.mxu0 0.0
        %660 = vmatprep.subr.mxu0 0.0
        %661 = vmatpush1.msra.mxu0 0.0
        %662 = vmatprep.subr.mxu0 0.0
        %663 = vmatpush1.msra.mxu0 0.0
        %664 = vmatprep.subr.mxu0 0.0
        %665 = vmatpush1.msra.mxu0 0.0
        %666 = vmatprep.subr.mxu0 0.0
        %667 = vmatpush1.msra.mxu0 0.0
        %668 = vmatprep.subr.mxu0 0.0
        %669 = vmatpush1.msra.mxu0 0.0
        %670 = vmatprep.subr.mxu0 0.0
        %671 = vmatpush1.msra.mxu0 0.0
        %672 = vmatprep.subr.mxu0 0.0
        %673 = vmatpush1.msra.mxu0 0.0
        %674 = vmatprep.subr.mxu0 0.0
        %675 = vmatpush1.msra.mxu0 0.0
        %676 = vmatprep.subr.mxu0 0.0
        %677 = vmatpush1.msra.mxu0 %v491
        %678 = vmatprep.subr.mxu0 0.0
        %679 = vmatpush2.msra.mxu0 0.0
        %680 = vmatprep.subr.mxu0 0.0
        %681 = vmatpush2.msra.mxu0 0.0
        %682 = vmatprep.subr.mxu0 0.0
        %683 = vmatpush2.msra.mxu0 0.0
        %684 = vmatprep.subr.mxu0 0.0
        %685 = vmatpush2.msra.mxu0 0.0
        %686 = vmatprep.subr.mxu0 0.0
        %687 = vmatpush2.msra.mxu0 0.0
        %688 = vmatprep.subr.mxu0 0.0
        %689 = vmatpush2.msra.mxu0 0.0
        %690 = vmatprep.subr.mxu0 0.0
        %691 = vmatpush2.msra.mxu0 0.0
        %692 = vmatprep.subr.mxu0 0.0
        %693 = vmatpush2.msra.mxu0 0.0
        %694 = vmatprep.subr.mxu0 0.0
        %695 = vmatpush2.msra.mxu0 0.0
        %696 = vmatprep.subr.mxu0 0.0
        %697 = vmatpush2.msra.mxu0 0.0
        %698 = vmatprep.subr.mxu0 0.0
        %699 = vmatpush2.msra.mxu0 0.0
        %700 = vmatprep.subr.mxu0 0.0
        %701 = vmatpush2.msra.mxu0 0.0
        %702 = vmatprep.subr.mxu0 0.0
        %703 = vmatpush2.msra.mxu0 0.0
        %704 = vmatprep.subr.mxu0 0.0
        %705 = vmatpush2.msra.mxu0 0.0
        %706 = vmatprep.subr.mxu0 0.0
        %707 = vmatpush2.msra.mxu0 0.0
        %708 = vmatprep.subr.mxu0 0.0
        %709 = vmatpush2.msra.mxu0 0.0
        %710 = vmatprep.mubr.f32.mxu0 0.0
        %711 = vmatmul.mubr.f32.gmra.mxu0 %v644
        %v712 = vpop.f32.mrf.mxu0
        %v713 = vadd.f32 %v429, %v712
        %v714 = vpop.f32.mrf.mxu0
        %715 = vdwg.mxu0
        %v716 = vsel %vm571, %v420, 0
        %718 = vmatprep.subr.mxu0 0.0
        %719 = vmatpush1.msra.mxu0 0.0
        %720 = vmatprep.subr.mxu0 0.0
        %721 = vmatpush1.msra.mxu0 0.0
        %722 = vmatprep.subr.mxu0 0.0
        %723 = vmatpush1.msra.mxu0 0.0
        %724 = vmatprep.subr.mxu0 0.0
        %725 = vmatpush1.msra.mxu0 0.0
        %726 = vmatprep.subr.mxu0 0.0
        %727 = vmatpush1.msra.mxu0 0.0
        %728 = vmatprep.subr.mxu0 0.0
        %729 = vmatpush1.msra.mxu0 0.0
        %730 = vmatprep.subr.mxu0 0.0
        %731 = vmatpush1.msra.mxu0 0.0
        %732 = vmatprep.subr.mxu0 0.0
        %733 = vmatpush1.msra.mxu0 0.0
        %734 = vmatprep.subr.mxu0 0.0
        %735 = vmatpush1.msra.mxu0 0.0
        %736 = vmatprep.subr.mxu0 0.0
        %737 = vmatpush1.msra.mxu0 0.0
        %738 = vmatprep.subr.mxu0 0.0
        %739 = vmatpush1.msra.mxu0 0.0
        %740 = vmatprep.subr.mxu0 0.0
        %741 = vmatpush1.msra.mxu0 0.0
        %742 = vmatprep.subr.mxu0 0.0
        %743 = vmatpush1.msra.mxu0 0.0
        %744 = vmatprep.subr.mxu0 0.0
        %745 = vmatpush1.msra.mxu0 0.0
        %746 = vmatprep.subr.mxu0 0.0
        %747 = vmatpush1.msra.mxu0 0.0
        %748 = vmatprep.subr.mxu0 0.0
        %749 = vmatpush1.msra.mxu0 %v523
        %750 = vmatprep.subr.mxu0 0.0
        %751 = vmatpush2.msra.mxu0 0.0
        %752 = vmatprep.subr.mxu0 0.0
        %753 = vmatpush2.msra.mxu0 0.0
        %754 = vmatprep.subr.mxu0 0.0
        %755 = vmatpush2.msra.mxu0 0.0
        %756 = vmatprep.subr.mxu0 0.0
        %757 = vmatpush2.msra.mxu0 0.0
        %758 = vmatprep.subr.mxu0 0.0
        %759 = vmatpush2.msra.mxu0 0.0
        %760 = vmatprep.subr.mxu0 0.0
        %761 = vmatpush2.msra.mxu0 0.0
        %762 = vmatprep.subr.mxu0 0.0
        %763 = vmatpush2.msra.mxu0 0.0
        %764 = vmatprep.subr.mxu0 0.0
        %765 = vmatpush2.msra.mxu0 0.0
        %766 = vmatprep.subr.mxu0 0.0
        %767 = vmatpush2.msra.mxu0 0.0
        %768 = vmatprep.subr.mxu0 0.0
        %769 = vmatpush2.msra.mxu0 0.0
        %770 = vmatprep.subr.mxu0 0.0
        %771 = vmatpush2.msra.mxu0 0.0
        %772 = vmatprep.subr.mxu0 0.0
        %773 = vmatpush2.msra.mxu0 0.0
        %774 = vmatprep.subr.mxu0 0.0
        %775 = vmatpush2.msra.mxu0 0.0
        %776 = vmatprep.subr.mxu0 0.0
        %777 = vmatpush2.msra.mxu0 0.0
        %778 = vmatprep.subr.mxu0 0.0
        %779 = vmatpush2.msra.mxu0 0.0
        %780 = vmatprep.subr.mxu0 0.0
        %781 = vmatpush2.msra.mxu0 0.0
        %782 = vmatprep.mubr.f32.mxu0 0.0
        %783 = vmatmul.mubr.f32.gmra.mxu0 %v716
        %v784 = vpop.f32.mrf.mxu0
        %v785 = vadd.f32 %v429, %v784
        %v786 = vpop.f32.mrf.mxu0
        %787 = vdwg.mxu0
        %v788 = vsel %vm571, %v422, 0
        %790 = vmatprep.subr.mxu0 0.0
        %791 = vmatpush1.msra.mxu0 0.0
        %792 = vmatprep.subr.mxu0 0.0
        %793 = vmatpush1.msra.mxu0 0.0
        %794 = vmatprep.subr.mxu0 0.0
        %795 = vmatpush1.msra.mxu0 0.0
        %796 = vmatprep.subr.mxu0 0.0
        %797 = vmatpush1.msra.mxu0 0.0
        %798 = vmatprep.subr.mxu0 0.0
        %799 = vmatpush1.msra.mxu0 0.0
        %800 = vmatprep.subr.mxu0 0.0
        %801 = vmatpush1.msra.mxu0 0.0
        %802 = vmatprep.subr.mxu0 0.0
        %803 = vmatpush1.msra.mxu0 0.0
        %804 = vmatprep.subr.mxu0 0.0
        %805 = vmatpush1.msra.mxu0 0.0
        %806 = vmatprep.subr.mxu0 0.0
        %807 = vmatpush1.msra.mxu0 0.0
        %808 = vmatprep.subr.mxu0 0.0
        %809 = vmatpush1.msra.mxu0 0.0
        %810 = vmatprep.subr.mxu0 0.0
        %811 = vmatpush1.msra.mxu0 0.0
        %812 = vmatprep.subr.mxu0 0.0
        %813 = vmatpush1.msra.mxu0 0.0
        %814 = vmatprep.subr.mxu0 0.0
        %815 = vmatpush1.msra.mxu0 0.0
        %816 = vmatprep.subr.mxu0 0.0
        %817 = vmatpush1.msra.mxu0 0.0
        %818 = vmatprep.subr.mxu0 0.0
        %819 = vmatpush1.msra.mxu0 0.0
        %820 = vmatprep.subr.mxu0 0.0
        %821 = vmatpush1.msra.mxu0 %v555
        %822 = vmatprep.subr.mxu0 0.0
        %823 = vmatpush2.msra.mxu0 0.0
        %824 = vmatprep.subr.mxu0 0.0
        %825 = vmatpush2.msra.mxu0 0.0
        %826 = vmatprep.subr.mxu0 0.0
        %827 = vmatpush2.msra.mxu0 0.0
        %828 = vmatprep.subr.mxu0 0.0
        %829 = vmatpush2.msra.mxu0 0.0
        %830 = vmatprep.subr.mxu0 0.0
        %831 = vmatpush2.msra.mxu0 0.0
        %832 = vmatprep.subr.mxu0 0.0
        %833 = vmatpush2.msra.mxu0 0.0
        %834 = vmatprep.subr.mxu0 0.0
        %835 = vmatpush2.msra.mxu0 0.0
        %836 = vmatprep.subr.mxu0 0.0
        %837 = vmatpush2.msra.mxu0 0.0
        %838 = vmatprep.subr.mxu0 0.0
        %839 = vmatpush2.msra.mxu0 0.0
        %840 = vmatprep.subr.mxu0 0.0
        %841 = vmatpush2.msra.mxu0 0.0
        %842 = vmatprep.subr.mxu0 0.0
        %843 = vmatpush2.msra.mxu0 0.0
        %844 = vmatprep.subr.mxu0 0.0
        %845 = vmatpush2.msra.mxu0 0.0
        %846 = vmatprep.subr.mxu0 0.0
        %847 = vmatpush2.msra.mxu0 0.0
        %848 = vmatprep.subr.mxu0 0.0
        %849 = vmatpush2.msra.mxu0 0.0
        %850 = vmatprep.subr.mxu0 0.0
        %851 = vmatpush2.msra.mxu0 0.0
        %852 = vmatprep.subr.mxu0 0.0
        %853 = vmatpush2.msra.mxu0 0.0
        %854 = vmatprep.mubr.f32.mxu0 0.0
        %855 = vmatmul.mubr.f32.gmra.mxu0 %v788
        %v856 = vpop.f32.mrf.mxu0
        %v857 = vadd.f32 %v429, %v856
        %v858 = vpop.f32.mrf.mxu0
        %859 = vdwg.mxu0
        %v860 = vsel %vm571, %v641, -inf
        %861 = vmax.xlane.f32.xlu0 %v860
        %v862 = vpop.xlane.xlu0 %861
        %v863 = vsel %vm571, %v713, -inf
        %864 = vmax.xlane.f32.xlu0 %v863
        %v865 = vpop.xlane.xlu0 %864
        %v866 = vsel %vm571, %v785, -inf
        %867 = vmax.xlane.f32.xlu0 %v866
        %v868 = vpop.xlane.xlu0 %867
        %v869 = vsel %vm571, %v857, -inf
        %870 = vmax.xlane.f32.xlu0 %v869
        %v871 = vpop.xlane.xlu0 %870
        %v872 = vsub.f32 %v641, %v862
        %v873 = vsub.f32 %v713, %v865
        %v874 = vsub.f32 %v785, %v868
        %v875 = vsub.f32 %v857, %v871
        %v876 = vmul.f32 %v872, 1.442695
        %v877 = vpow.pop %v876
        %v878 = vmul.f32 %v873, 1.442695
        %v879 = vpow.pop %v878
        %v880 = vmul.f32 %v874, 1.442695
        %v881 = vpow.pop %v880
        %v882 = vmul.f32 %v875, 1.442695
        %v883 = vpow.pop %v882
        %v884 = vsel %vm571, %v877, 0.0
        %885 = vadd.xlane.f32.xlu0 %v884
        %v886 = vpop.xlane.xlu0 %885
        %v887 = vsel %vm571, %v879, 0.0
        %888 = vadd.xlane.f32.xlu0 %v887
        %v889 = vpop.xlane.xlu0 %888
        %v890 = vsel %vm571, %v881, 0.0
        %891 = vadd.xlane.f32.xlu0 %v890
        %v892 = vpop.xlane.xlu0 %891
        %v893 = vsel %vm571, %v883, 0.0
        %894 = vadd.xlane.f32.xlu0 %v893
        %v895 = vpop.xlane.xlu0 %894
        %v896 = vrcp.pop %v886
        %v897 = vrcp.pop %v889
        %v898 = vrcp.pop %v892
        %v899 = vrcp.pop %v895
        %v900 = vmul.f32 %v877, %v896
        %v901 = vmul.f32 %v879, %v897
        %v902 = vmul.f32 %v881, %v898
        %v903 = vmul.f32 %v883, %v899
        %904 = vrot.lane.b32.xlu0 %v411, 64
        %v905 = vpop.permute.xlu0 %904
        %906 = vrot.lane.b32.xlu0 %v418, 64
        %v907 = vpop.permute.xlu0 %906
        %908 = vrot.lane.b32.xlu0 %v420, 64
        %v909 = vpop.permute.xlu0 %908
        %910 = vrot.lane.b32.xlu0 %v422, 64
        %v911 = vpop.permute.xlu0 %910
        %916 = vxpose.xlu0.b32.start [1/16] %v905, 128
        %917 = vxpose.xlu0.b32.cont [2/16] 0.0, 128
        %918 = vxpose.xlu0.b32.cont [3/16] 0.0, 128
        %919 = vxpose.xlu0.b32.cont [4/16] 0.0, 128
        %920 = vxpose.xlu0.b32.cont [5/16] 0.0, 128
        %921 = vxpose.xlu0.b32.cont [6/16] 0.0, 128
        %922 = vxpose.xlu0.b32.cont [7/16] 0.0, 128
        %923 = vxpose.xlu0.b32.cont [8/16] 0.0, 128
        %924 = vxpose.xlu0.b32.cont [9/16] 0.0, 128
        %925 = vxpose.xlu0.b32.cont [10/16] 0.0, 128
        %926 = vxpose.xlu0.b32.cont [11/16] 0.0, 128
        %927 = vxpose.xlu0.b32.cont [12/16] 0.0, 128
        %928 = vxpose.xlu0.b32.cont [13/16] 0.0, 128
        %929 = vxpose.xlu0.b32.cont [14/16] 0.0, 128
        %930 = vxpose.xlu0.b32.cont [15/16] 0.0, 128
        %931 = vxpose.xlu0.b32.end [16/16] 0.0, 128
        %v932 = vpop.trf.xlu0
        %v933 = vpop.trf.xlu0
        %v934 = vpop.trf.xlu0
        %v935 = vpop.trf.xlu0
        %v936 = vpop.trf.xlu0
        %v937 = vpop.trf.xlu0
        %v938 = vpop.trf.xlu0
        %v939 = vpop.trf.xlu0
        %v940 = vpop.trf.xlu0
        %v941 = vpop.trf.xlu0
        %v942 = vpop.trf.xlu0
        %v943 = vpop.trf.xlu0
        %v944 = vpop.trf.xlu0
        %v945 = vpop.trf.xlu0
        %v946 = vpop.trf.xlu0
        %v947 = vpop.trf.xlu0
        %948 = vxpose.xlu0.b32.start [1/16] %v907, 128
        %949 = vxpose.xlu0.b32.cont [2/16] 0.0, 128
        %950 = vxpose.xlu0.b32.cont [3/16] 0.0, 128
        %951 = vxpose.xlu0.b32.cont [4/16] 0.0, 128
        %952 = vxpose.xlu0.b32.cont [5/16] 0.0, 128
        %953 = vxpose.xlu0.b32.cont [6/16] 0.0, 128
        %954 = vxpose.xlu0.b32.cont [7/16] 0.0, 128
        %955 = vxpose.xlu0.b32.cont [8/16] 0.0, 128
        %956 = vxpose.xlu0.b32.cont [9/16] 0.0, 128
        %957 = vxpose.xlu0.b32.cont [10/16] 0.0, 128
        %958 = vxpose.xlu0.b32.cont [11/16] 0.0, 128
        %959 = vxpose.xlu0.b32.cont [12/16] 0.0, 128
        %960 = vxpose.xlu0.b32.cont [13/16] 0.0, 128
        %961 = vxpose.xlu0.b32.cont [14/16] 0.0, 128
        %962 = vxpose.xlu0.b32.cont [15/16] 0.0, 128
        %963 = vxpose.xlu0.b32.end [16/16] 0.0, 128
        %v964 = vpop.trf.xlu0
        %v965 = vpop.trf.xlu0
        %v966 = vpop.trf.xlu0
        %v967 = vpop.trf.xlu0
        %v968 = vpop.trf.xlu0
        %v969 = vpop.trf.xlu0
        %v970 = vpop.trf.xlu0
        %v971 = vpop.trf.xlu0
        %v972 = vpop.trf.xlu0
        %v973 = vpop.trf.xlu0
        %v974 = vpop.trf.xlu0
        %v975 = vpop.trf.xlu0
        %v976 = vpop.trf.xlu0
        %v977 = vpop.trf.xlu0
        %v978 = vpop.trf.xlu0
        %v979 = vpop.trf.xlu0
        %980 = vxpose.xlu0.b32.start [1/16] %v909, 128
        %981 = vxpose.xlu0.b32.cont [2/16] 0.0, 128
        %982 = vxpose.xlu0.b32.cont [3/16] 0.0, 128
        %983 = vxpose.xlu0.b32.cont [4/16] 0.0, 128
        %984 = vxpose.xlu0.b32.cont [5/16] 0.0, 128
        %985 = vxpose.xlu0.b32.cont [6/16] 0.0, 128
        %986 = vxpose.xlu0.b32.cont [7/16] 0.0, 128
        %987 = vxpose.xlu0.b32.cont [8/16] 0.0, 128
        %988 = vxpose.xlu0.b32.cont [9/16] 0.0, 128
        %989 = vxpose.xlu0.b32.cont [10/16] 0.0, 128
        %990 = vxpose.xlu0.b32.cont [11/16] 0.0, 128
        %991 = vxpose.xlu0.b32.cont [12/16] 0.0, 128
        %992 = vxpose.xlu0.b32.cont [13/16] 0.0, 128
        %993 = vxpose.xlu0.b32.cont [14/16] 0.0, 128
        %994 = vxpose.xlu0.b32.cont [15/16] 0.0, 128
        %995 = vxpose.xlu0.b32.end [16/16] 0.0, 128
        %v996 = vpop.trf.xlu0
        %v997 = vpop.trf.xlu0
        %v998 = vpop.trf.xlu0
        %v999 = vpop.trf.xlu0
        %v1000 = vpop.trf.xlu0
        %v1001 = vpop.trf.xlu0
        %v1002 = vpop.trf.xlu0
        %v1003 = vpop.trf.xlu0
        %v1004 = vpop.trf.xlu0
        %v1005 = vpop.trf.xlu0
        %v1006 = vpop.trf.xlu0
        %v1007 = vpop.trf.xlu0
        %v1008 = vpop.trf.xlu0
        %v1009 = vpop.trf.xlu0
        %v1010 = vpop.trf.xlu0
        %v1011 = vpop.trf.xlu0
        %1012 = vxpose.xlu0.b32.start [1/16] %v911, 128
        %1013 = vxpose.xlu0.b32.cont [2/16] 0.0, 128
        %1014 = vxpose.xlu0.b32.cont [3/16] 0.0, 128
        %1015 = vxpose.xlu0.b32.cont [4/16] 0.0, 128
        %1016 = vxpose.xlu0.b32.cont [5/16] 0.0, 128
        %1017 = vxpose.xlu0.b32.cont [6/16] 0.0, 128
        %1018 = vxpose.xlu0.b32.cont [7/16] 0.0, 128
        %1019 = vxpose.xlu0.b32.cont [8/16] 0.0, 128
        %1020 = vxpose.xlu0.b32.cont [9/16] 0.0, 128
        %1021 = vxpose.xlu0.b32.cont [10/16] 0.0, 128
        %1022 = vxpose.xlu0.b32.cont [11/16] 0.0, 128
        %1023 = vxpose.xlu0.b32.cont [12/16] 0.0, 128
        %1024 = vxpose.xlu0.b32.cont [13/16] 0.0, 128
        %1025 = vxpose.xlu0.b32.cont [14/16] 0.0, 128
        %1026 = vxpose.xlu0.b32.cont [15/16] 0.0, 128
        %1027 = vxpose.xlu0.b32.end [16/16] 0.0, 128
        %v1028 = vpop.trf.xlu0
        %v1029 = vpop.trf.xlu0
        %v1030 = vpop.trf.xlu0
        %v1031 = vpop.trf.xlu0
        %v1032 = vpop.trf.xlu0
        %v1033 = vpop.trf.xlu0
        %v1034 = vpop.trf.xlu0
        %v1035 = vpop.trf.xlu0
        %v1036 = vpop.trf.xlu0
        %v1037 = vpop.trf.xlu0
        %v1038 = vpop.trf.xlu0
        %v1039 = vpop.trf.xlu0
        %v1040 = vpop.trf.xlu0
        %v1041 = vpop.trf.xlu0
        %v1042 = vpop.trf.xlu0
        %v1043 = vpop.trf.xlu0
        %v1045 = vsel %vm571, %v932, 0
        %v1048 = vsel %vm571, %v900, 0
        %1050 = vmatprep.subr.mxu0 0.0
        %1051 = vmatpush1.xpose.msra.mxu0 0.0
        %1052 = vmatprep.subr.mxu0 0.0
        %1053 = vmatpush1.xpose.msra.mxu0 0.0
        %1054 = vmatprep.subr.mxu0 0.0
        %1055 = vmatpush1.xpose.msra.mxu0 0.0
        %1056 = vmatprep.subr.mxu0 0.0
        %1057 = vmatpush1.xpose.msra.mxu0 0.0
        %1058 = vmatprep.subr.mxu0 0.0
        %1059 = vmatpush1.xpose.msra.mxu0 0.0
        %1060 = vmatprep.subr.mxu0 0.0
        %1061 = vmatpush1.xpose.msra.mxu0 0.0
        %1062 = vmatprep.subr.mxu0 0.0
        %1063 = vmatpush1.xpose.msra.mxu0 0.0
        %1064 = vmatprep.subr.mxu0 0.0
        %1065 = vmatpush1.xpose.msra.mxu0 0.0
        %1066 = vmatprep.subr.mxu0 0.0
        %1067 = vmatpush1.xpose.msra.mxu0 0.0
        %1068 = vmatprep.subr.mxu0 0.0
        %1069 = vmatpush1.xpose.msra.mxu0 0.0
        %1070 = vmatprep.subr.mxu0 0.0
        %1071 = vmatpush1.xpose.msra.mxu0 0.0
        %1072 = vmatprep.subr.mxu0 0.0
        %1073 = vmatpush1.xpose.msra.mxu0 0.0
        %1074 = vmatprep.subr.mxu0 0.0
        %1075 = vmatpush1.xpose.msra.mxu0 0.0
        %1076 = vmatprep.subr.mxu0 0.0
        %1077 = vmatpush1.xpose.msra.mxu0 0.0
        %1078 = vmatprep.subr.mxu0 0.0
        %1079 = vmatpush1.xpose.msra.mxu0 0.0
        %1080 = vmatprep.subr.mxu0 0.0
        %1081 = vmatpush1.xpose.msra.mxu0 %v1048
        %1082 = vmatprep.subr.mxu0 0.0
        %1083 = vmatpush2.xpose.msra.mxu0 0.0
        %1084 = vmatprep.subr.mxu0 0.0
        %1085 = vmatpush2.xpose.msra.mxu0 0.0
        %1086 = vmatprep.subr.mxu0 0.0
        %1087 = vmatpush2.xpose.msra.mxu0 0.0
        %1088 = vmatprep.subr.mxu0 0.0
        %1089 = vmatpush2.xpose.msra.mxu0 0.0
        %1090 = vmatprep.subr.mxu0 0.0
        %1091 = vmatpush2.xpose.msra.mxu0 0.0
        %1092 = vmatprep.subr.mxu0 0.0
        %1093 = vmatpush2.xpose.msra.mxu0 0.0
        %1094 = vmatprep.subr.mxu0 0.0
        %1095 = vmatpush2.xpose.msra.mxu0 0.0
        %1096 = vmatprep.subr.mxu0 0.0
        %1097 = vmatpush2.xpose.msra.mxu0 0.0
        %1098 = vmatprep.subr.mxu0 0.0
        %1099 = vmatpush2.xpose.msra.mxu0 0.0
        %1100 = vmatprep.subr.mxu0 0.0
        %1101 = vmatpush2.xpose.msra.mxu0 0.0
        %1102 = vmatprep.subr.mxu0 0.0
        %1103 = vmatpush2.xpose.msra.mxu0 0.0
        %1104 = vmatprep.subr.mxu0 0.0
        %1105 = vmatpush2.xpose.msra.mxu0 0.0
        %1106 = vmatprep.subr.mxu0 0.0
        %1107 = vmatpush2.xpose.msra.mxu0 0.0
        %1108 = vmatprep.subr.mxu0 0.0
        %1109 = vmatpush2.xpose.msra.mxu0 0.0
        %1110 = vmatprep.subr.mxu0 0.0
        %1111 = vmatpush2.xpose.msra.mxu0 0.0
        %1112 = vmatprep.subr.mxu0 0.0
        %1113 = vmatpush2.xpose.msra.mxu0 0.0
        %1114 = vmatprep.mubr.f32.mxu0 0.0
        %1115 = vmatmul.mubr.f32.gmra.mxu0 %v1045
        %v1116 = vpop.f32.mrf.mxu0
        %v1117 = vadd.f32 0.0, %v1116
        %v1118 = vpop.f32.mrf.mxu0
        %1119 = vdwg.mxu0
        %v1121 = vsel %vm571, %v964, 0
        %v1124 = vsel %vm571, %v901, 0
        %1126 = vmatprep.subr.mxu0 0.0
        %1127 = vmatpush1.xpose.msra.mxu0 0.0
        %1128 = vmatprep.subr.mxu0 0.0
        %1129 = vmatpush1.xpose.msra.mxu0 0.0
        %1130 = vmatprep.subr.mxu0 0.0
        %1131 = vmatpush1.xpose.msra.mxu0 0.0
        %1132 = vmatprep.subr.mxu0 0.0
        %1133 = vmatpush1.xpose.msra.mxu0 0.0
        %1134 = vmatprep.subr.mxu0 0.0
        %1135 = vmatpush1.xpose.msra.mxu0 0.0
        %1136 = vmatprep.subr.mxu0 0.0
        %1137 = vmatpush1.xpose.msra.mxu0 0.0
        %1138 = vmatprep.subr.mxu0 0.0
        %1139 = vmatpush1.xpose.msra.mxu0 0.0
        %1140 = vmatprep.subr.mxu0 0.0
        %1141 = vmatpush1.xpose.msra.mxu0 0.0
        %1142 = vmatprep.subr.mxu0 0.0
        %1143 = vmatpush1.xpose.msra.mxu0 0.0
        %1144 = vmatprep.subr.mxu0 0.0
        %1145 = vmatpush1.xpose.msra.mxu0 0.0
        %1146 = vmatprep.subr.mxu0 0.0
        %1147 = vmatpush1.xpose.msra.mxu0 0.0
        %1148 = vmatprep.subr.mxu0 0.0
        %1149 = vmatpush1.xpose.msra.mxu0 0.0
        %1150 = vmatprep.subr.mxu0 0.0
        %1151 = vmatpush1.xpose.msra.mxu0 0.0
        %1152 = vmatprep.subr.mxu0 0.0
        %1153 = vmatpush1.xpose.msra.mxu0 0.0
        %1154 = vmatprep.subr.mxu0 0.0
        %1155 = vmatpush1.xpose.msra.mxu0 0.0
        %1156 = vmatprep.subr.mxu0 0.0
        %1157 = vmatpush1.xpose.msra.mxu0 %v1124
        %1158 = vmatprep.subr.mxu0 0.0
        %1159 = vmatpush2.xpose.msra.mxu0 0.0
        %1160 = vmatprep.subr.mxu0 0.0
        %1161 = vmatpush2.xpose.msra.mxu0 0.0
        %1162 = vmatprep.subr.mxu0 0.0
        %1163 = vmatpush2.xpose.msra.mxu0 0.0
        %1164 = vmatprep.subr.mxu0 0.0
        %1165 = vmatpush2.xpose.msra.mxu0 0.0
        %1166 = vmatprep.subr.mxu0 0.0
        %1167 = vmatpush2.xpose.msra.mxu0 0.0
        %1168 = vmatprep.subr.mxu0 0.0
        %1169 = vmatpush2.xpose.msra.mxu0 0.0
        %1170 = vmatprep.subr.mxu0 0.0
        %1171 = vmatpush2.xpose.msra.mxu0 0.0
        %1172 = vmatprep.subr.mxu0 0.0
        %1173 = vmatpush2.xpose.msra.mxu0 0.0
        %1174 = vmatprep.subr.mxu0 0.0
        %1175 = vmatpush2.xpose.msra.mxu0 0.0
        %1176 = vmatprep.subr.mxu0 0.0
        %1177 = vmatpush2.xpose.msra.mxu0 0.0
        %1178 = vmatprep.subr.mxu0 0.0
        %1179 = vmatpush2.xpose.msra.mxu0 0.0
        %1180 = vmatprep.subr.mxu0 0.0
        %1181 = vmatpush2.xpose.msra.mxu0 0.0
        %1182 = vmatprep.subr.mxu0 0.0
        %1183 = vmatpush2.xpose.msra.mxu0 0.0
        %1184 = vmatprep.subr.mxu0 0.0
        %1185 = vmatpush2.xpose.msra.mxu0 0.0
        %1186 = vmatprep.subr.mxu0 0.0
        %1187 = vmatpush2.xpose.msra.mxu0 0.0
        %1188 = vmatprep.subr.mxu0 0.0
        %1189 = vmatpush2.xpose.msra.mxu0 0.0
        %1190 = vmatprep.mubr.f32.mxu0 0.0
        %1191 = vmatmul.mubr.f32.gmra.mxu0 %v1121
        %v1192 = vpop.f32.mrf.mxu0
        %v1193 = vadd.f32 0.0, %v1192
        %v1194 = vpop.f32.mrf.mxu0
        %1195 = vdwg.mxu0
        %v1197 = vsel %vm571, %v996, 0
        %v1200 = vsel %vm571, %v902, 0
        %1202 = vmatprep.subr.mxu0 0.0
        %1203 = vmatpush1.xpose.msra.mxu0 0.0
        %1204 = vmatprep.subr.mxu0 0.0
        %1205 = vmatpush1.xpose.msra.mxu0 0.0
        %1206 = vmatprep.subr.mxu0 0.0
        %1207 = vmatpush1.xpose.msra.mxu0 0.0
        %1208 = vmatprep.subr.mxu0 0.0
        %1209 = vmatpush1.xpose.msra.mxu0 0.0
        %1210 = vmatprep.subr.mxu0 0.0
        %1211 = vmatpush1.xpose.msra.mxu0 0.0
        %1212 = vmatprep.subr.mxu0 0.0
        %1213 = vmatpush1.xpose.msra.mxu0 0.0
        %1214 = vmatprep.subr.mxu0 0.0
        %1215 = vmatpush1.xpose.msra.mxu0 0.0
        %1216 = vmatprep.subr.mxu0 0.0
        %1217 = vmatpush1.xpose.msra.mxu0 0.0
        %1218 = vmatprep.subr.mxu0 0.0
        %1219 = vmatpush1.xpose.msra.mxu0 0.0
        %1220 = vmatprep.subr.mxu0 0.0
        %1221 = vmatpush1.xpose.msra.mxu0 0.0
        %1222 = vmatprep.subr.mxu0 0.0
        %1223 = vmatpush1.xpose.msra.mxu0 0.0
        %1224 = vmatprep.subr.mxu0 0.0
        %1225 = vmatpush1.xpose.msra.mxu0 0.0
        %1226 = vmatprep.subr.mxu0 0.0
        %1227 = vmatpush1.xpose.msra.mxu0 0.0
        %1228 = vmatprep.subr.mxu0 0.0
        %1229 = vmatpush1.xpose.msra.mxu0 0.0
        %1230 = vmatprep.subr.mxu0 0.0
        %1231 = vmatpush1.xpose.msra.mxu0 0.0
        %1232 = vmatprep.subr.mxu0 0.0
        %1233 = vmatpush1.xpose.msra.mxu0 %v1200
        %1234 = vmatprep.subr.mxu0 0.0
        %1235 = vmatpush2.xpose.msra.mxu0 0.0
        %1236 = vmatprep.subr.mxu0 0.0
        %1237 = vmatpush2.xpose.msra.mxu0 0.0
        %1238 = vmatprep.subr.mxu0 0.0
        %1239 = vmatpush2.xpose.msra.mxu0 0.0
        %1240 = vmatprep.subr.mxu0 0.0
        %1241 = vmatpush2.xpose.msra.mxu0 0.0
        %1242 = vmatprep.subr.mxu0 0.0
        %1243 = vmatpush2.xpose.msra.mxu0 0.0
        %1244 = vmatprep.subr.mxu0 0.0
        %1245 = vmatpush2.xpose.msra.mxu0 0.0
        %1246 = vmatprep.subr.mxu0 0.0
        %1247 = vmatpush2.xpose.msra.mxu0 0.0
        %1248 = vmatprep.subr.mxu0 0.0
        %1249 = vmatpush2.xpose.msra.mxu0 0.0
        %1250 = vmatprep.subr.mxu0 0.0
        %1251 = vmatpush2.xpose.msra.mxu0 0.0
        %1252 = vmatprep.subr.mxu0 0.0
        %1253 = vmatpush2.xpose.msra.mxu0 0.0
        %1254 = vmatprep.subr.mxu0 0.0
        %1255 = vmatpush2.xpose.msra.mxu0 0.0
        %1256 = vmatprep.subr.mxu0 0.0
        %1257 = vmatpush2.xpose.msra.mxu0 0.0
        %1258 = vmatprep.subr.mxu0 0.0
        %1259 = vmatpush2.xpose.msra.mxu0 0.0
        %1260 = vmatprep.subr.mxu0 0.0
        %1261 = vmatpush2.xpose.msra.mxu0 0.0
        %1262 = vmatprep.subr.mxu0 0.0
        %1263 = vmatpush2.xpose.msra.mxu0 0.0
        %1264 = vmatprep.subr.mxu0 0.0
        %1265 = vmatpush2.xpose.msra.mxu0 0.0
        %1266 = vmatprep.mubr.f32.mxu0 0.0
        %1267 = vmatmul.mubr.f32.gmra.mxu0 %v1197
        %v1268 = vpop.f32.mrf.mxu0
        %v1269 = vadd.f32 0.0, %v1268
        %v1270 = vpop.f32.mrf.mxu0
        %1271 = vdwg.mxu0
        %v1273 = vsel %vm571, %v1028, 0
        %v1276 = vsel %vm571, %v903, 0
        %1278 = vmatprep.subr.mxu0 0.0
        %1279 = vmatpush1.xpose.msra.mxu0 0.0
        %1280 = vmatprep.subr.mxu0 0.0
        %1281 = vmatpush1.xpose.msra.mxu0 0.0
        %1282 = vmatprep.subr.mxu0 0.0
        %1283 = vmatpush1.xpose.msra.mxu0 0.0
        %1284 = vmatprep.subr.mxu0 0.0
        %1285 = vmatpush1.xpose.msra.mxu0 0.0
        %1286 = vmatprep.subr.mxu0 0.0
        %1287 = vmatpush1.xpose.msra.mxu0 0.0
        %1288 = vmatprep.subr.mxu0 0.0
        %1289 = vmatpush1.xpose.msra.mxu0 0.0
        %1290 = vmatprep.subr.mxu0 0.0
        %1291 = vmatpush1.xpose.msra.mxu0 0.0
        %1292 = vmatprep.subr.mxu0 0.0
        %1293 = vmatpush1.xpose.msra.mxu0 0.0
        %1294 = vmatprep.subr.mxu0 0.0
        %1295 = vmatpush1.xpose.msra.mxu0 0.0
        %1296 = vmatprep.subr.mxu0 0.0
        %1297 = vmatpush1.xpose.msra.mxu0 0.0
        %1298 = vmatprep.subr.mxu0 0.0
        %1299 = vmatpush1.xpose.msra.mxu0 0.0
        %1300 = vmatprep.subr.mxu0 0.0
        %1301 = vmatpush1.xpose.msra.mxu0 0.0
        %1302 = vmatprep.subr.mxu0 0.0
        %1303 = vmatpush1.xpose.msra.mxu0 0.0
        %1304 = vmatprep.subr.mxu0 0.0
        %1305 = vmatpush1.xpose.msra.mxu0 0.0
        %1306 = vmatprep.subr.mxu0 0.0
        %1307 = vmatpush1.xpose.msra.mxu0 0.0
        %1308 = vmatprep.subr.mxu0 0.0
        %1309 = vmatpush1.xpose.msra.mxu0 %v1276
        %1310 = vmatprep.subr.mxu0 0.0
        %1311 = vmatpush2.xpose.msra.mxu0 0.0
        %1312 = vmatprep.subr.mxu0 0.0
        %1313 = vmatpush2.xpose.msra.mxu0 0.0
        %1314 = vmatprep.subr.mxu0 0.0
        %1315 = vmatpush2.xpose.msra.mxu0 0.0
        %1316 = vmatprep.subr.mxu0 0.0
        %1317 = vmatpush2.xpose.msra.mxu0 0.0
        %1318 = vmatprep.subr.mxu0 0.0
        %1319 = vmatpush2.xpose.msra.mxu0 0.0
        %1320 = vmatprep.subr.mxu0 0.0
        %1321 = vmatpush2.xpose.msra.mxu0 0.0
        %1322 = vmatprep.subr.mxu0 0.0
        %1323 = vmatpush2.xpose.msra.mxu0 0.0
        %1324 = vmatprep.subr.mxu0 0.0
        %1325 = vmatpush2.xpose.msra.mxu0 0.0
        %1326 = vmatprep.subr.mxu0 0.0
        %1327 = vmatpush2.xpose.msra.mxu0 0.0
        %1328 = vmatprep.subr.mxu0 0.0
        %1329 = vmatpush2.xpose.msra.mxu0 0.0
        %1330 = vmatprep.subr.mxu0 0.0
        %1331 = vmatpush2.xpose.msra.mxu0 0.0
        %1332 = vmatprep.subr.mxu0 0.0
        %1333 = vmatpush2.xpose.msra.mxu0 0.0
        %1334 = vmatprep.subr.mxu0 0.0
        %1335 = vmatpush2.xpose.msra.mxu0 0.0
        %1336 = vmatprep.subr.mxu0 0.0
        %1337 = vmatpush2.xpose.msra.mxu0 0.0
        %1338 = vmatprep.subr.mxu0 0.0
        %1339 = vmatpush2.xpose.msra.mxu0 0.0
        %1340 = vmatprep.subr.mxu0 0.0
        %1341 = vmatpush2.xpose.msra.mxu0 0.0
        %1342 = vmatprep.mubr.f32.mxu0 0.0
        %1343 = vmatmul.mubr.f32.gmra.mxu0 %v1273
        %v1344 = vpop.f32.mrf.mxu0
        %v1345 = vadd.f32 0.0, %v1344
        %v1346 = vpop.f32.mrf.mxu0
        %1347 = vdwg.mxu0
        %1348 = vxpose.xlu0.b32.start [1/16] %v1117, 128
        %1349 = vxpose.xlu0.b32.cont [2/16] 0.0, 128
        %1350 = vxpose.xlu0.b32.cont [3/16] 0.0, 128
        %1351 = vxpose.xlu0.b32.cont [4/16] 0.0, 128
        %1352 = vxpose.xlu0.b32.cont [5/16] 0.0, 128
        %1353 = vxpose.xlu0.b32.cont [6/16] 0.0, 128
        %1354 = vxpose.xlu0.b32.cont [7/16] 0.0, 128
        %1355 = vxpose.xlu0.b32.cont [8/16] 0.0, 128
        %1356 = vxpose.xlu0.b32.cont [9/16] 0.0, 128
        %1357 = vxpose.xlu0.b32.cont [10/16] 0.0, 128
        %1358 = vxpose.xlu0.b32.cont [11/16] 0.0, 128
        %1359 = vxpose.xlu0.b32.cont [12/16] 0.0, 128
        %1360 = vxpose.xlu0.b32.cont [13/16] 0.0, 128
        %1361 = vxpose.xlu0.b32.cont [14/16] 0.0, 128
        %1362 = vxpose.xlu0.b32.cont [15/16] 0.0, 128
        %1363 = vxpose.xlu0.b32.end [16/16] 0.0, 128
        %v1364 = vpop.trf.xlu0
        %v1365 = vpop.trf.xlu0
        %v1366 = vpop.trf.xlu0
        %v1367 = vpop.trf.xlu0
        %v1368 = vpop.trf.xlu0
        %v1369 = vpop.trf.xlu0
        %v1370 = vpop.trf.xlu0
        %v1371 = vpop.trf.xlu0
        %v1372 = vpop.trf.xlu0
        %v1373 = vpop.trf.xlu0
        %v1374 = vpop.trf.xlu0
        %v1375 = vpop.trf.xlu0
        %v1376 = vpop.trf.xlu0
        %v1377 = vpop.trf.xlu0
        %v1378 = vpop.trf.xlu0
        %v1379 = vpop.trf.xlu0
        %1380 = vxpose.xlu0.b32.start [1/16] %v1193, 128
        %1381 = vxpose.xlu0.b32.cont [2/16] 0.0, 128
        %1382 = vxpose.xlu0.b32.cont [3/16] 0.0, 128
        %1383 = vxpose.xlu0.b32.cont [4/16] 0.0, 128
        %1384 = vxpose.xlu0.b32.cont [5/16] 0.0, 128
        %1385 = vxpose.xlu0.b32.cont [6/16] 0.0, 128
        %1386 = vxpose.xlu0.b32.cont [7/16] 0.0, 128
        %1387 = vxpose.xlu0.b32.cont [8/16] 0.0, 128
        %1388 = vxpose.xlu0.b32.cont [9/16] 0.0, 128
        %1389 = vxpose.xlu0.b32.cont [10/16] 0.0, 128
        %1390 = vxpose.xlu0.b32.cont [11/16] 0.0, 128
        %1391 = vxpose.xlu0.b32.cont [12/16] 0.0, 128
        %1392 = vxpose.xlu0.b32.cont [13/16] 0.0, 128
        %1393 = vxpose.xlu0.b32.cont [14/16] 0.0, 128
        %1394 = vxpose.xlu0.b32.cont [15/16] 0.0, 128
        %1395 = vxpose.xlu0.b32.end [16/16] 0.0, 128
        %v1396 = vpop.trf.xlu0
        %v1397 = vpop.trf.xlu0
        %v1398 = vpop.trf.xlu0
        %v1399 = vpop.trf.xlu0
        %v1400 = vpop.trf.xlu0
        %v1401 = vpop.trf.xlu0
        %v1402 = vpop.trf.xlu0
        %v1403 = vpop.trf.xlu0
        %v1404 = vpop.trf.xlu0
        %v1405 = vpop.trf.xlu0
        %v1406 = vpop.trf.xlu0
        %v1407 = vpop.trf.xlu0
        %v1408 = vpop.trf.xlu0
        %v1409 = vpop.trf.xlu0
        %v1410 = vpop.trf.xlu0
        %v1411 = vpop.trf.xlu0
        %1412 = vxpose.xlu0.b32.start [1/16] %v1269, 128
        %1413 = vxpose.xlu0.b32.cont [2/16] 0.0, 128
        %1414 = vxpose.xlu0.b32.cont [3/16] 0.0, 128
        %1415 = vxpose.xlu0.b32.cont [4/16] 0.0, 128
        %1416 = vxpose.xlu0.b32.cont [5/16] 0.0, 128
        %1417 = vxpose.xlu0.b32.cont [6/16] 0.0, 128
        %1418 = vxpose.xlu0.b32.cont [7/16] 0.0, 128
        %1419 = vxpose.xlu0.b32.cont [8/16] 0.0, 128
        %1420 = vxpose.xlu0.b32.cont [9/16] 0.0, 128
        %1421 = vxpose.xlu0.b32.cont [10/16] 0.0, 128
        %1422 = vxpose.xlu0.b32.cont [11/16] 0.0, 128
        %1423 = vxpose.xlu0.b32.cont [12/16] 0.0, 128
        %1424 = vxpose.xlu0.b32.cont [13/16] 0.0, 128
        %1425 = vxpose.xlu0.b32.cont [14/16] 0.0, 128
        %1426 = vxpose.xlu0.b32.cont [15/16] 0.0, 128
        %1427 = vxpose.xlu0.b32.end [16/16] 0.0, 128
        %v1428 = vpop.trf.xlu0
        %v1429 = vpop.trf.xlu0
        %v1430 = vpop.trf.xlu0
        %v1431 = vpop.trf.xlu0
        %v1432 = vpop.trf.xlu0
        %v1433 = vpop.trf.xlu0
        %v1434 = vpop.trf.xlu0
        %v1435 = vpop.trf.xlu0
        %v1436 = vpop.trf.xlu0
        %v1437 = vpop.trf.xlu0
        %v1438 = vpop.trf.xlu0
        %v1439 = vpop.trf.xlu0
        %v1440 = vpop.trf.xlu0
        %v1441 = vpop.trf.xlu0
        %v1442 = vpop.trf.xlu0
        %v1443 = vpop.trf.xlu0
        %1444 = vxpose.xlu0.b32.start [1/16] %v1345, 128
        %1445 = vxpose.xlu0.b32.cont [2/16] 0.0, 128
        %1446 = vxpose.xlu0.b32.cont [3/16] 0.0, 128
        %1447 = vxpose.xlu0.b32.cont [4/16] 0.0, 128
        %1448 = vxpose.xlu0.b32.cont [5/16] 0.0, 128
        %1449 = vxpose.xlu0.b32.cont [6/16] 0.0, 128
        %1450 = vxpose.xlu0.b32.cont [7/16] 0.0, 128
        %1451 = vxpose.xlu0.b32.cont [8/16] 0.0, 128
        %1452 = vxpose.xlu0.b32.cont [9/16] 0.0, 128
        %1453 = vxpose.xlu0.b32.cont [10/16] 0.0, 128
        %1454 = vxpose.xlu0.b32.cont [11/16] 0.0, 128
        %1455 = vxpose.xlu0.b32.cont [12/16] 0.0, 128
        %1456 = vxpose.xlu0.b32.cont [13/16] 0.0, 128
        %1457 = vxpose.xlu0.b32.cont [14/16] 0.0, 128
        %1458 = vxpose.xlu0.b32.cont [15/16] 0.0, 128
        %1459 = vxpose.xlu0.b32.end [16/16] 0.0, 128
        %v1460 = vpop.trf.xlu0
        %v1461 = vpop.trf.xlu0
        %v1462 = vpop.trf.xlu0
        %v1463 = vpop.trf.xlu0
        %v1464 = vpop.trf.xlu0
        %v1465 = vpop.trf.xlu0
        %v1466 = vpop.trf.xlu0
        %v1467 = vpop.trf.xlu0
        %v1468 = vpop.trf.xlu0
        %v1469 = vpop.trf.xlu0
        %v1470 = vpop.trf.xlu0
        %v1471 = vpop.trf.xlu0
        %v1472 = vpop.trf.xlu0
        %v1473 = vpop.trf.xlu0
        %v1474 = vpop.trf.xlu0
        %v1475 = vpop.trf.xlu0
        %v1476 = vcombine.low %v1364, %v1428
        %v1477 = vcombine.high %v1364, %v1428
        %v1479 = vunpack.c.l.s4 1983009808
        %v1480 = vunpack.c.0.s8 %v1479
        %v1481 = vlaneseq
        %v1482 = vshrl.u32 %v1481, 7
        %v1483 = vsub.s32 %v1480, %v1482
        %v1484 = vrot.slane %v1476, %v1483
        %v1486 = vunpack.c.l.s4 1983009808
        %v1487 = vunpack.c.0.s8 %v1486
        %v1488 = vlaneseq
        %v1489 = vshrl.u32 %v1488, 7
        %v1490 = vsub.s32 %v1487, %v1489
        %v1491 = vrot.slane %v1477, %v1490
        %v1492 = vcombine.low %v1396, %v1460
        %v1493 = vcombine.high %v1396, %v1460
        %v1495 = vunpack.c.l.s4 1983009808
        %v1496 = vunpack.c.0.s8 %v1495
        %v1497 = vlaneseq
        %v1498 = vshrl.u32 %v1497, 7
        %v1499 = vsub.s32 %v1496, %v1498
        %v1500 = vrot.slane %v1492, %v1499
        %v1502 = vunpack.c.l.s4 1983009808
        %v1503 = vunpack.c.0.s8 %v1502
        %v1504 = vlaneseq
        %v1505 = vshrl.u32 %v1504, 7
        %v1506 = vsub.s32 %v1503, %v1505
        %v1507 = vrot.slane %v1493, %v1506
        %v1508 = vcombine.low %v1484, %v1500
        %v1509 = vcombine.high %v1484, %v1500
        %v1511 = vunpack.c.l.s4 1934713408
        %v1512 = vunpack.c.0.s8 %v1511
        %v1513 = vlaneseq
        %v1514 = vshrl.u32 %v1513, 7
        %v1515 = vsub.s32 %v1512, %v1514
        %v1516 = vrot.slane %v1508, %v1515
        %v1518 = vunpack.c.l.s4 1934713408
        %v1519 = vunpack.c.0.s8 %v1518
        %v1520 = vlaneseq
        %v1521 = vshrl.u32 %v1520, 7
        %v1522 = vsub.s32 %v1519, %v1521
        %v1523 = vrot.slane %v1509, %v1522
        %v1524 = vcombine.low %v1491, %v1507
        %v1525 = vcombine.high %v1491, %v1507
        %v1527 = vunpack.c.l.s4 1934713408
        %v1528 = vunpack.c.0.s8 %v1527
        %v1529 = vlaneseq
        %v1530 = vshrl.u32 %v1529, 7
        %v1531 = vsub.s32 %v1528, %v1530
        %v1532 = vrot.slane %v1524, %v1531
        %v1534 = vunpack.c.l.s4 1934713408
        %v1535 = vunpack.c.0.s8 %v1534
        %v1536 = vlaneseq
        %v1537 = vshrl.u32 %v1536, 7
        %v1538 = vsub.s32 %v1535, %v1537
        %v1539 = vrot.slane %v1525, %v1538
        %v1540 = vcombine.high %v1516, 0.0
        %v1541 = vcombine.high %v1523, 0.0
        %v1542 = vcombine.high %v1532, 0.0
        %v1543 = vcombine.high %v1539, 0.0
        %v1544 = vcombine.low %v1516, %v1523
        %v1546 = vunpack.c.l.s4 1983009808
        %v1547 = vunpack.c.0.s8 %v1546
        %v1548 = vlaneseq
        %v1549 = vshrl.u32 %v1548, 7
        %v1550 = vsub.s32 %v1547, %v1549
        %v1551 = vrot.slane %v1544, %v1550
        %v1552 = vcombine.low %v1540, %v1541
        %v1554 = vunpack.c.l.s4 1983009808
        %v1555 = vunpack.c.0.s8 %v1554
        %v1556 = vlaneseq
        %v1557 = vshrl.u32 %v1556, 7
        %v1558 = vsub.s32 %v1555, %v1557
        %v1559 = vrot.slane %v1552, %v1558
        %v1560 = vcombine.low %v1532, %v1539
        %v1562 = vunpack.c.l.s4 1983009808
        %v1563 = vunpack.c.0.s8 %v1562
        %v1564 = vlaneseq
        %v1565 = vshrl.u32 %v1564, 7
        %v1566 = vsub.s32 %v1563, %v1565
        %v1567 = vrot.slane %v1560, %v1566
        %v1568 = vcombine.low %v1542, %v1543
        %v1570 = vunpack.c.l.s4 1983009808
        %v1571 = vunpack.c.0.s8 %v1570
        %v1572 = vlaneseq
        %v1573 = vshrl.u32 %v1572, 7
        %v1574 = vsub.s32 %v1571, %v1573
        %v1575 = vrot.slane %v1568, %v1574
        %v1576 = vcombine.low %v1551, %v1559
        %v1577 = vcombine.high %v1551, %v1559
        %v1579 = vunpack.c.l.s4 1934713408
        %v1580 = vunpack.c.0.s8 %v1579
        %v1581 = vlaneseq
        %v1582 = vshrl.u32 %v1581, 7
        %v1583 = vsub.s32 %v1580, %v1582
        %v1584 = vrot.slane %v1576, %v1583
        %v1586 = vunpack.c.l.s4 1934713408
        %v1587 = vunpack.c.0.s8 %v1586
        %v1588 = vlaneseq
        %v1589 = vshrl.u32 %v1588, 7
        %v1590 = vsub.s32 %v1587, %v1589
        %v1591 = vrot.slane %v1577, %v1590
        %v1592 = vcombine.low %v1567, %v1575
        %v1593 = vcombine.high %v1567, %v1575
        %v1595 = vunpack.c.l.s4 1934713408
        %v1596 = vunpack.c.0.s8 %v1595
        %v1597 = vlaneseq
        %v1598 = vshrl.u32 %v1597, 7
        %v1599 = vsub.s32 %v1596, %v1598
        %v1600 = vrot.slane %v1592, %v1599
        %v1602 = vunpack.c.l.s4 1934713408
        %v1603 = vunpack.c.0.s8 %v1602
        %v1604 = vlaneseq
        %v1605 = vshrl.u32 %v1604, 7
        %v1606 = vsub.s32 %v1603, %v1605
        %v1607 = vrot.slane %v1593, %v1606
        %v1608 = vcombine.low %v1584, %v1600
        %v1609 = vcombine.high %v1584, %v1600
        %v1610 = vcombine.low %v1591, %v1607
        %v1611 = vcombine.high %v1591, %v1607
        %1613 = vrot.lane.b32.xlu0 %v1609, 8
        %v1614 = vpop.permute.xlu0 %1613
        %1617 = vrot.lane.b32.xlu0 %v1610, 16
        %v1618 = vpop.permute.xlu0 %1617
        %1621 = vrot.lane.b32.xlu0 %v1611, 24
        %v1622 = vpop.permute.xlu0 %1621
        %v1624 = vsel %vm571, %v1608, %v1614
        %vm1625 = vcmask 130048
        %v1626 = vsel %vm1625, %v1624, %v1618
        %vm1627 = vcmask 195584
        %v1628 = vsel %vm1627, %v1626, %v1622
        %v1629 = vpack.c.bf16 %v1628, %v1628
        %v1630 = vld [vmem:[%s3] sm:$0xf]
        %v1631 = vld [vmem:[%s3 + $0x4] sm:$0xf]
        %v1632 = vld [vmem:[%s3 + $0x8] sm:$0xf]
        %v1633 = vld [vmem:[%s3 + $0xc] sm:$0xf]
        %v1634 = vlaneseq
        %v1635 = vshrl.u32 %v1634, 7
        %v1636 = vsub.s32 5, %v1635
        %v1637 = vrot.slane %v326, %v1636
        %v1642 = vunpack.c.l.b16 %v1630
        %v1643 = vunpack.c.l.b16 %v1631
        %v1644 = vunpack.c.l.b16 %v1632
        %v1645 = vunpack.c.l.b16 %v1633
        %v1646 = vpack.c.b16 %v1643, %v1642
        %v1647 = vpack.c.b16 %v1645, %v1644
        %v1651 = vsel %vm327, %v1629, 0
        %1653 = vmatprep.subr.bf16.mxu0 0
        %1654 = vmatpush1.bf16.msra.mxu0 0
        %1655 = vmatprep.subr.bf16.mxu0 0
        %1656 = vmatpush1.bf16.msra.mxu0 0
        %1657 = vmatprep.subr.bf16.mxu0 0
        %1658 = vmatpush1.bf16.msra.mxu0 0
        %1659 = vmatprep.subr.bf16.mxu0 0
        %1660 = vmatpush1.bf16.msra.mxu0 0
        %1661 = vmatprep.subr.bf16.mxu0 0
        %1662 = vmatpush1.bf16.msra.mxu0 0
        %1663 = vmatprep.subr.bf16.mxu0 0
        %1664 = vmatpush1.bf16.msra.mxu0 0
        %1665 = vmatprep.subr.bf16.mxu0 0
        %1666 = vmatpush1.bf16.msra.mxu0 %v1647
        %1667 = vmatprep.subr.bf16.mxu0 0
        %1668 = vmatpush1.bf16.msra.mxu0 %v1646
        %1669 = vmatprep.subr.bf16.mxu0 0
        %1670 = vmatpush2.bf16.msra.mxu0 0
        %1671 = vmatprep.subr.bf16.mxu0 0
        %1672 = vmatpush2.bf16.msra.mxu0 0
        %1673 = vmatprep.subr.bf16.mxu0 0
        %1674 = vmatpush2.bf16.msra.mxu0 0
        %1675 = vmatprep.subr.bf16.mxu0 0
        %1676 = vmatpush2.bf16.msra.mxu0 0
        %1677 = vmatprep.subr.bf16.mxu0 0
        %1678 = vmatpush2.bf16.msra.mxu0 0
        %1679 = vmatprep.subr.bf16.mxu0 0
        %1680 = vmatpush2.bf16.msra.mxu0 0
        %1681 = vmatprep.subr.bf16.mxu0 0
        %1682 = vmatpush2.bf16.msra.mxu0 0
        %1683 = vmatprep.subr.bf16.mxu0 0
        %1684 = vmatpush2.bf16.msra.mxu0 0
        %1685 = vmatprep.mubr.bf16.mxu0 0
        %1686 = vmatmul.mubr.bf16.gmra.mxu0 %v1651
        %v1687 = vpop.f32.mrf.mxu0
        %v1688 = vadd.f32 %v1637, %v1687
        %v1689 = vpop.f32.mrf.mxu0
        %v1690 = vpop.f32.mrf.mxu0
        %v1691 = vpop.f32.mrf.mxu0
        %1692 = vdwg.mxu0
        %v1693 = vadd.f32 %v1688, %v324
        %v1694 = vsel %vm327, %v1693, 0.0
        %1695 = vadd.xlane.f32.xlu0 %v1694
        %v1696 = vpop.xlane.xlu0 %1695
        %v1697 = vmul.f32 %v1696, %v331
        %v1698 = vsub.f32 %v1693, %v1697
        %v1699 = vmul.f32 %v1698, %v1698
        %v1700 = vsel %vm327, %v1699, 0.0
        %1701 = vadd.xlane.f32.xlu0 %v1700
        %v1702 = vpop.xlane.xlu0 %1701
        %v1703 = vmul.f32 %v1702, %v331
        %v1704 = vadd.f32 %v1703, 1e-06
        %v1705 = vrsqrt.pop %v1704
        %v1706 = vmul.f32 %v1698, %v1705
        %v1707 = vlaneseq
        %v1708 = vshrl.u32 %v1707, 7
        %v1709 = vsub.s32 2, %v1708
        %v1710 = vrot.slane %v326, %v1709
        %v1711 = vmul.f32 %v1706, %v1710
        %v1712 = vlaneseq
        %v1713 = vshrl.u32 %v1712, 7
        %v1714 = vsub.s32 3, %v1713
        %v1715 = vrot.slane %v326, %v1714
        %v1716 = vadd.f32 %v1711, %v1715
        %v1717 = vpack.c.bf16 %v1716, %v1716
        %v1718 = vld [vmem:[#allocation5] sm:$0xf]
        %v1719 = vld [vmem:[#allocation5 + $0x4] sm:$0xf]
        %v1720 = vld [vmem:[#allocation5 + $0x8] sm:$0xf]
        %v1721 = vld [vmem:[#allocation5 + $0xc] sm:$0xf]
        %v1722 = vlaneseq
        %v1723 = vshrl.u32 %v1722, 7
        %v1724 = vsub.s32 6, %v1723
        %v1725 = vrot.slane %v326, %v1724
        %v1730 = vunpack.c.l.b16 %v1718
        %v1731 = vunpack.c.l.b16 %v1719
        %v1732 = vunpack.c.l.b16 %v1720
        %v1733 = vunpack.c.l.b16 %v1721
        %v1734 = vpack.c.b16 %v1731, %v1730
        %v1735 = vpack.c.b16 %v1733, %v1732
        %v1739 = vsel %vm327, %v1717, 0
        %1741 = vmatprep.subr.bf16.mxu0 0
        %1742 = vmatpush1.bf16.msra.mxu0 0
        %1743 = vmatprep.subr.bf16.mxu0 0
        %1744 = vmatpush1.bf16.msra.mxu0 0
        %1745 = vmatprep.subr.bf16.mxu0 0
        %1746 = vmatpush1.bf16.msra.mxu0 0
        %1747 = vmatprep.subr.bf16.mxu0 0
        %1748 = vmatpush1.bf16.msra.mxu0 0
        %1749 = vmatprep.subr.bf16.mxu0 0
        %1750 = vmatpush1.bf16.msra.mxu0 0
        %1751 = vmatprep.subr.bf16.mxu0 0
        %1752 = vmatpush1.bf16.msra.mxu0 0
        %1753 = vmatprep.subr.bf16.mxu0 0
        %1754 = vmatpush1.bf16.msra.mxu0 %v1735
        %1755 = vmatprep.subr.bf16.mxu0 0
        %1756 = vmatpush1.bf16.msra.mxu0 %v1734
        %1757 = vmatprep.subr.bf16.mxu0 0
        %1758 = vmatpush2.bf16.msra.mxu0 0
        %1759 = vmatprep.subr.bf16.mxu0 0
        %1760 = vmatpush2.bf16.msra.mxu0 0
        %1761 = vmatprep.subr.bf16.mxu0 0
        %1762 = vmatpush2.bf16.msra.mxu0 0
        %1763 = vmatprep.subr.bf16.mxu0 0
        %1764 = vmatpush2.bf16.msra.mxu0 0
        %1765 = vmatprep.subr.bf16.mxu0 0
        %1766 = vmatpush2.bf16.msra.mxu0 0
        %1767 = vmatprep.subr.bf16.mxu0 0
        %1768 = vmatpush2.bf16.msra.mxu0 0
        %1769 = vmatprep.subr.bf16.mxu0 0
        %1770 = vmatpush2.bf16.msra.mxu0 0
        %1771 = vmatprep.subr.bf16.mxu0 0
        %1772 = vmatpush2.bf16.msra.mxu0 0
        %1773 = vmatprep.mubr.bf16.mxu0 0
        %1774 = vmatmul.mubr.bf16.gmra.mxu0 %v1739
        %v1775 = vpop.f32.mrf.mxu0
        %v1776 = vadd.f32 %v1725, %v1775
        %v1777 = vpop.f32.mrf.mxu0
        %v1778 = vpop.f32.mrf.mxu0
        %v1779 = vpop.f32.mrf.mxu0
        %1780 = vdwg.mxu0
        %v1781 = vmax.f32 %v1776, 0.0
        %v1782 = vpack.c.bf16 %v1781, %v1781
        %v1783 = vld [vmem:[%s5] sm:$0xf]
        %v1784 = vld [vmem:[%s5 + $0x4] sm:$0xf]
        %v1785 = vld [vmem:[%s5 + $0x8] sm:$0xf]
        %v1786 = vld [vmem:[%s5 + $0xc] sm:$0xf]
        %v1787 = vld [vmem:[%s5 + $0x10] sm:$0xf]
        %v1788 = vld [vmem:[%s5 + $0x14] sm:$0xf]
        %v1789 = vld [vmem:[%s5 + $0x18] sm:$0xf]
        %v1790 = vld [vmem:[%s5 + $0x1c] sm:$0xf]
        %v1791 = vlaneseq
        %v1792 = vshrl.u32 %v1791, 7
        %v1793 = vsub.s32 7, %v1792
        %v1794 = vrot.slane %v326, %v1793
        %v1803 = vunpack.c.l.b16 %v1783
        %v1804 = vunpack.c.l.b16 %v1784
        %v1805 = vunpack.c.l.b16 %v1785
        %v1806 = vunpack.c.l.b16 %v1786
        %v1807 = vunpack.c.l.b16 %v1787
        %v1808 = vunpack.c.l.b16 %v1788
        %v1809 = vunpack.c.l.b16 %v1789
        %v1810 = vunpack.c.l.b16 %v1790
        %v1811 = vpack.c.b16 %v1804, %v1803
        %v1812 = vpack.c.b16 %v1806, %v1805
        %v1813 = vpack.c.b16 %v1808, %v1807
        %v1814 = vpack.c.b16 %v1810, %v1809
        %vm1819 = vcmask 523264
        %v1821 = vsel %vm1819, %v1782, 0
        %1823 = vmatprep.subr.bf16.mxu0 0
        %1824 = vmatpush1.bf16.msra.mxu0 0
        %1825 = vmatprep.subr.bf16.mxu0 0
        %1826 = vmatpush1.bf16.msra.mxu0 0
        %1827 = vmatprep.subr.bf16.mxu0 0
        %1828 = vmatpush1.bf16.msra.mxu0 0
        %1829 = vmatprep.subr.bf16.mxu0 0
        %1830 = vmatpush1.bf16.msra.mxu0 0
        %1831 = vmatprep.subr.bf16.mxu0 0
        %1832 = vmatpush1.bf16.msra.mxu0 %v1814
        %1833 = vmatprep.subr.bf16.mxu0 0
        %1834 = vmatpush1.bf16.msra.mxu0 %v1813
        %1835 = vmatprep.subr.bf16.mxu0 0
        %1836 = vmatpush1.bf16.msra.mxu0 %v1812
        %1837 = vmatprep.subr.bf16.mxu0 0
        %1838 = vmatpush1.bf16.msra.mxu0 %v1811
        %1839 = vmatprep.subr.bf16.mxu0 0
        %1840 = vmatpush2.bf16.msra.mxu0 0
        %1841 = vmatprep.subr.bf16.mxu0 0
        %1842 = vmatpush2.bf16.msra.mxu0 0
        %1843 = vmatprep.subr.bf16.mxu0 0
        %1844 = vmatpush2.bf16.msra.mxu0 0
        %1845 = vmatprep.subr.bf16.mxu0 0
        %1846 = vmatpush2.bf16.msra.mxu0 0
        %1847 = vmatprep.subr.bf16.mxu0 0
        %1848 = vmatpush2.bf16.msra.mxu0 0
        %1849 = vmatprep.subr.bf16.mxu0 0
        %1850 = vmatpush2.bf16.msra.mxu0 0
        %1851 = vmatprep.subr.bf16.mxu0 0
        %1852 = vmatpush2.bf16.msra.mxu0 0
        %1853 = vmatprep.subr.bf16.mxu0 0
        %1854 = vmatpush2.bf16.msra.mxu0 0
        %1855 = vmatprep.mubr.bf16.mxu0 0
        %1856 = vmatmul.mubr.bf16.gmra.mxu0 %v1821
        %v1857 = vpop.f32.mrf.mxu0
        %v1858 = vadd.f32 %v1794, %v1857
        %v1859 = vpop.f32.mrf.mxu0
        %v1860 = vpop.f32.mrf.mxu0
        %v1861 = vpop.f32.mrf.mxu0
        %1862 = vdwg.mxu0
        %v1863 = vadd.f32 %v1858, %v1693
        %1864 = vst.msk [vmem:[%s318] sm:$0xff] %vm327, %v1863
        %s1865 = sand.u32 %s190, 1
        %s1866 = scalar_lea.sflag [#allocation4], %s1865
        %s1867 = sand.u32 %s190, 1
        %s1868 = smul.addr %s1867, 8
        %s1869 = scalar_lea.vmem [#allocation7], %s1868
        // Predicated region
        $region57: #{transformer_encoder_layer.1} parent=47 // pred_check
          %p1870 = pneg %p200
        $region58: #{transformer_encoder_layer.1} parent=47 // pred_check_branch
          %1872 = sbr.rel (%p1870) target = $region60
        $region59: #{transformer_encoder_layer.1} parent=47 // pred_region
          %s1874 = ssub.s32 128, 128
          %1875 = vsyncadd %s1866, %s1874
          %s1876 = smul.addr %s25, 128
          %s1877 = scalar_lea.hbm %s7, %s1876
          %s1879 = sshll.u32 %s1869, 4
          %s1880 = int_to_ptr.vmem [resolvable:$true] %s1879
          %1882 = dma.vmem_to_hbm [thread:$0]  %s1880, 128, %s1877, %s1866
        $region60: #{transformer_encoder_layer.1} parent=47 // pred_fallthru
          _
      $region48: #{transformer_encoder_layer.1} parent=5 // pred_fallthru
        _
      %p1883 = scmp.le.s32.totalorder 2, %s20
      // Predicated region
      $region61: #{transformer_encoder_layer.1} parent=5 // pred_check
        %p1884 = pneg %p1883
      $region62: #{transformer_encoder_layer.1} parent=5 // pred_check_branch
        %1886 = sbr.rel (%p1884) target = $region64
      $region63: #{transformer_encoder_layer.1} parent=5 // pred_region
        %s1887 = ssub.s32 %s20, 2
        // Predicated region
        $region65: #{transformer_encoder_layer.1} parent=63 // pred_check
          %p1888 = pneg %p206
        $region66: #{transformer_encoder_layer.1} parent=63 // pred_check_branch
          %1890 = sbr.rel (%p1888) target = $region68
        $region67: #{transformer_encoder_layer.1} parent=63 // pred_region
          %s1891 = sand.u32 %s191, 1
          %s1892 = scalar_lea.sflag [#allocation4], %s1891
          %s1893 = sand.u32 %s191, 1
          %s1894 = smul.addr %s1893, 8
          %s1895 = scalar_lea.vmem [#allocation7], %s1894
          %1896 = dma.done %s1892, 128
        $region68: #{transformer_encoder_layer.1} parent=63 // pred_fallthru
          _
      $region64: #{transformer_encoder_layer.1} parent=5 // pred_fallthru
        _
    $region6: #{transformer_encoder_layer.1} parent=1 // loop_footer
      %s24 = sadd.s32 1, %s20
    $region7: #{transformer_encoder_layer.1} parent=1 // loop_footer_branch
      %19 = sbr.rel target = $region3
    $region8: #{transformer_encoder_layer.1} parent=1 // loop_exit
      _
    %1897 = vsyncpa [#allocation3], 1
    %s1898 = scalar_lea.sflag [#allocation3], 1
    %1899 = vsyncpa %s1898, 1
    %1900 = vsyncpa [#allocation6], 1
    %1901 = vsyncpa [#allocation4], 1
    %s1902 = scalar_lea.sflag [#allocation4], 1
    %1903 = vsyncpa %s1902, 1

</llo_original>
